<compile_context>
chip_gen: v7x
topology: tpu7x:2x2x1
jax: 0.10.0
libtpu: 0.0.40
codegen_flags: <defaults>
</compile_context>

<pallas_src>
import functools

import jax
import jax.numpy as jnp
from jax import lax
from jax.experimental import pallas as pl
from jax.experimental.pallas import tpu as pltpu

_HALO = 128          # lane-aligned zero halo on each side of the flat spatial axis
_SUBLANE_BF16 = 16   # bf16 packed sublane tile


def fold_bn(gamma, beta, running_mean, running_var, eps=1e-5):
    scale = gamma / jnp.sqrt(running_var + eps)
    bias = beta - running_mean * scale
    return scale, bias


def _round_up(x, m):
    return (x + m - 1) // m * m


def _pick_batch_tile(n):
    # Batch several images per grid step (amortize step overhead, fatten DMAs)
    # but keep >= 2 grid steps so megacore "parallel" splitting has work.
    for bt in (8, 4, 2, 1):
        if n % bt == 0 and n // bt >= 2:
            return bt
    return n


def _make_basic_block_kernel(H, W, P, Ppad, C, Cp, BT, nonlin):
    """Fused conv3x3+BN+ReLU -> conv3x3+BN -> +residual -> (ReLU) kernel.

    Channel-major layout (C, H*W) with H*W on the 128-lane axis.  Per conv:
      1. build an im2col slab (9*Cp, Ppad) in VMEM from 9 shifted, masked
         slices of a zero-haloed f32 scratch (cast to bf16 on store),
      2. one bf16 MXU matmul (Cout, 9*Cp) @ (9*Cp, Ppad), f32 accumulation.
    BN scale is folded into the weights (wrapper); only the bias is added here.
    """
    taps = [(oh, ow) for oh in (-1, 0, 1) for ow in (-1, 0, 1)]

    def kernel(x_ref, w1_ref, b1_ref, w2_ref, b2_ref, out_ref, xpad, mid, slab):
        # --- per grid step: establish the zero regions the convs rely on.
        # (Scratch is per-core and persists across steps; with "parallel"
        #  semantics a core may start at any program_id, so don't gate on it.)
        if Cp != C:
            # zero pad-channels, halos and spatial tail in one full-ref store
            xpad[...] = jnp.zeros((Cp, Ppad + 2 * _HALO), jnp.float32)
            mid[...] = jnp.zeros((Cp, Ppad + 2 * _HALO), jnp.float32)
        else:
            xpad[:, :_HALO] = jnp.zeros((Cp, _HALO), jnp.float32)
            xpad[:, _HALO + Ppad:] = jnp.zeros((Cp, _HALO), jnp.float32)
            mid[:, :_HALO] = jnp.zeros((Cp, _HALO), jnp.float32)
            mid[:, _HALO + Ppad:] = jnp.zeros((Cp, _HALO), jnp.float32)

        # Column-validity masks for the +/-1 width shifts (row over/underflow
        # reads the zero halo, so no row masks are needed).
        col = lax.broadcasted_iota(jnp.int32, (1, Ppad), 1) % W
        m_left = col >= 1           # tap reads x[.., w-1]
        m_right = col <= W - 2      # tap reads x[.., w+1]
        if Ppad != P:
            pos = lax.broadcasted_iota(jnp.int32, (1, Ppad), 1)
            m_tail = pos < P

        def build_slab(src_ref):
            # im2col: 9 shifted (Cp, Ppad) windows -> (9*Cp, Ppad) bf16 slab.
            # All slab stores are full 16-row, tile-aligned packed stores.
            for t, (oh, ow) in enumerate(taps):
                s = _HALO + oh * W + ow
                xs = src_ref[:, s:s + Ppad]
                if ow == -1:
                    xs = jnp.where(m_left, xs, 0.0)
                elif ow == 1:
                    xs = jnp.where(m_right, xs, 0.0)
                slab[t * Cp:(t + 1) * Cp, :] = xs.astype(jnp.bfloat16)

        def image_body(b, carry):
            # stage image b into the haloed scratch (lane-dense interior store)
            xpad[0:C, _HALO:_HALO + Ppad] = x_ref[b].astype(jnp.float32)

            # conv1 (BN1 scale folded into weights) + bias + ReLU
            build_slab(xpad)
            h1 = jnp.dot(w1_ref[...], slab[...],
                         preferred_element_type=jnp.float32)
            h1 = jnp.maximum(h1 + b1_ref[...], 0.0)
            if Ppad != P:
                h1 = jnp.where(m_tail, h1, 0.0)   # keep the spatial tail zero
            mid[0:C, _HALO:_HALO + Ppad] = h1

            # conv2 (BN2 folded) + bias + identity residual (+ optional ReLU)
            build_slab(mid)
            h2 = jnp.dot(w2_ref[...], slab[...],
                         preferred_element_type=jnp.float32)
            h2 = h2 + b2_ref[...] + xpad[0:C, _HALO:_HALO + Ppad]
            if nonlin:
                h2 = jnp.maximum(h2, 0.0)
            out_ref[b] = h2.astype(out_ref.dtype)
            return carry

        lax.fori_loop(0, BT, image_body, 0)

    return kernel


def basic_block_pallas(x_nchw, w1_hwio, bn1, w2_hwio, bn2, nonlin=True):
    """BasicBlock forward. Input/output NCHW (PyTorch convention), stride=1."""
    N, Cin, H, W = x_nchw.shape
    C1 = w1_hwio.shape[-1]
    C2 = w2_hwio.shape[-1]
    assert w1_hwio.shape == (3, 3, Cin, C1)
    assert w2_hwio.shape == (3, 3, C1, C2)
    assert C1 == C2 == Cin, "identity residual requires planes == inplanes"
    assert W + 1 <= _HALO

    C = Cin
    P = H * W
    Ppad = _round_up(P, 128)            # lane-dense spatial axis
    Cp = _round_up(C, _SUBLANE_BF16)    # bf16-tile aligned im2col group stride

    s1, b1 = fold_bn(*bn1)
    s2, b2 = fold_bn(*bn2)

    def prep_w(w_hwio, scale, cin, cout):
        # fold BN scale, reorder to (Cout, tap, Cin), zero-pad Cin->Cp, flatten
        w = w_hwio * scale[None, None, None, :]
        w = jnp.transpose(w, (3, 0, 1, 2)).reshape(cout, 9, cin)
        w = jnp.pad(w, ((0, 0), (0, 0), (0, Cp - cin)))
        return w.reshape(cout, 9 * Cp).astype(jnp.bfloat16)

    w1m = prep_w(w1_hwio, s1, Cin, C1)
    w2m = prep_w(w2_hwio, s2, C1, C2)
    b1c = b1.reshape(C1, 1).astype(jnp.float32)
    b2c = b2.reshape(C2, 1).astype(jnp.float32)

    x_flat = x_nchw.reshape(N, C, P)    # contiguous reshape: no HBM transpose
    if Ppad != P:
        x_flat = jnp.pad(x_flat, ((0, 0), (0, 0), (0, Ppad - P)))

    BT = _pick_batch_tile(N)
    assert N % BT == 0

    kernel = _make_basic_block_kernel(H, W, P, Ppad, C, Cp, BT, nonlin)

    out_flat = pl.pallas_call(
        kernel,
        out_shape=jax.ShapeDtypeStruct((N, C, Ppad), x_nchw.dtype),
        grid=(N // BT,),
        in_specs=[
            pl.BlockSpec((BT, C, Ppad), lambda n: (n, 0, 0)),   # image tile
            pl.BlockSpec((C, 9 * Cp), lambda n: (0, 0)),        # conv1 weights
            pl.BlockSpec((C, 1), lambda n: (0, 0)),             # bn1 bias
            pl.BlockSpec((C, 9 * Cp), lambda n: (0, 0)),        # conv2 weights
            pl.BlockSpec((C, 1), lambda n: (0, 0)),             # bn2 bias
        ],
        out_specs=pl.BlockSpec((BT, C, Ppad), lambda n: (n, 0, 0)),
        scratch_shapes=[
            pltpu.VMEM((Cp, Ppad + 2 * _HALO), jnp.float32),    # haloed input
            pltpu.VMEM((Cp, Ppad + 2 * _HALO), jnp.float32),    # haloed conv1 act
            pltpu.VMEM((9 * Cp, Ppad), jnp.bfloat16),           # im2col slab
        ],
        compiler_params=pltpu.CompilerParams(
            dimension_semantics=("parallel",),
            vmem_limit_bytes=64 * 1024 * 1024),
    )(x_flat, w1m, b1c, w2m, b2c)

    if Ppad != P:
        out_flat = out_flat[:, :, :P]
    return out_flat.reshape(N, C, H, W)


def init_basic_block_params(key, inplanes, planes):
    """Deterministic synthetic parameter init (shapes from BasicBlock.__init__)."""
    ks = jax.random.split(key, 8)
    w1 = jax.random.normal(ks[0], (3, 3, inplanes, planes), jnp.float32) * 0.1
    w2 = jax.random.normal(ks[1], (3, 3, planes, planes), jnp.float32) * 0.1
    bn1_gamma = 1.0 + 0.1 * jax.random.normal(ks[2], (planes,), jnp.float32)
    bn1_beta = 0.1 * jax.random.normal(ks[3], (planes,), jnp.float32)
    bn1_mean = 0.1 * jax.random.normal(ks[4], (planes,), jnp.float32)
    bn1_var = jnp.abs(1.0 + 0.1 * jax.random.normal(ks[5], (planes,), jnp.float32))
    bn2_gamma = 1.0 + 0.1 * jax.random.normal(ks[6], (planes,), jnp.float32)
    bn2_beta = 0.1 * jax.random.normal(ks[7], (planes,), jnp.float32)
    bn2_mean = jnp.zeros((planes,), jnp.float32)
    bn2_var = jnp.ones((planes,), jnp.float32)
    return dict(
        w1=w1, w2=w2,
        bn1=(bn1_gamma, bn1_beta, bn1_mean, bn1_var),
        bn2=(bn2_gamma, bn2_beta, bn2_mean, bn2_var),
    )


@functools.partial(jax.jit, static_argnames=("nonlin",))
def basic_block_forward(x_nchw, params, nonlin=True):
    return basic_block_pallas(x_nchw, params["w1"], params["bn1"],
                              params["w2"], params["bn2"], nonlin=nonlin)


def _reference_forward(x_nchw, params, nonlin=True):
    """Pure-JAX reference (lax conv) for validation only."""
    x = jnp.transpose(x_nchw, (0, 2, 3, 1))
    dn = lax.conv_dimension_numbers(x.shape, params["w1"].shape,
                                    ("NHWC", "HWIO", "NHWC"))
    s1, b1 = fold_bn(*params["bn1"])
    s2, b2 = fold_bn(*params["bn2"])
    out = lax.conv_general_dilated(x, params["w1"], (1, 1), "SAME",
                                   dimension_numbers=dn)
    out = jnp.maximum(out * s1 + b1, 0.0)
    out = lax.conv_general_dilated(out, params["w2"], (1, 1), "SAME",
                                   dimension_numbers=dn)
    out = out * s2 + b2 + x
    if nonlin:
        out = jnp.maximum(out, 0.0)
    return jnp.transpose(out, (0, 3, 1, 2))


if __name__ == "__main__":
    key = jax.random.PRNGKey(0)
    k_x, k_p = jax.random.split(key)

    N, C, H, W = 4, 4, 16, 16          # inplanes = planes = 4, stride = 1
    x = jax.random.normal(k_x, (N, C, H, W), jnp.float32)
    params = init_basic_block_params(k_p, inplanes=C, planes=C)

    out = basic_block_forward(x, params, nonlin=True)
    out = jax.block_until_ready(out)

    ref = _reference_forward(x, params, nonlin=True)
    assert out.shape == (N, C, H, W)
    err = float(jnp.max(jnp.abs(out - ref)))
    # bf16 matmul operands (f32 accumulation) -> loosened tolerance vs f32 ref.
    assert err < 5e-2, f"max abs err {err}"

    print("KERNEL_OK")
</pallas_src>

<mosaic_0001>
module attributes {stable_mosaic.version = 11 : i64} {
  func.func @kernel(%arg0: i32, %arg1: memref<2x4x256xf32, #tpu.memory_space<vmem>>, %arg2: memref<4x144xbf16, #tpu.memory_space<vmem>>, %arg3: memref<4x1xf32, #tpu.memory_space<vmem>>, %arg4: memref<4x144xbf16, #tpu.memory_space<vmem>>, %arg5: memref<4x1xf32, #tpu.memory_space<vmem>>, %arg6: memref<2x4x256xf32, #tpu.memory_space<vmem>>, %arg7: memref<16x512xf32, #tpu.memory_space<vmem>>, %arg8: memref<16x512xf32, #tpu.memory_space<vmem>>, %arg9: memref<144x256xbf16, #tpu.memory_space<vmem>>) attributes {dimension_semantics = [#tpu.dimension_semantics<parallel>], iteration_bounds = array<i64: 2>, scalar_prefetch = 0 : i64, scratch_operands = 3 : i64, tpu.core_type = #tpu.core_type<tc>, window_params = [{transform_indices = @transform_0, window_bounds = array<i64: 2, 4, 256>}, {pipeline_mode = #tpu.pipeline_mode<synchronous>, transform_indices = @transform_1, window_bounds = array<i64: 4, 144>}, {pipeline_mode = #tpu.pipeline_mode<synchronous>, transform_indices = @transform_2, window_bounds = array<i64: 4, 1>}, {pipeline_mode = #tpu.pipeline_mode<synchronous>, transform_indices = @transform_3, window_bounds = array<i64: 4, 144>}, {pipeline_mode = #tpu.pipeline_mode<synchronous>, transform_indices = @transform_4, window_bounds = array<i64: 4, 1>}, {transform_indices = @transform_5, window_bounds = array<i64: 2, 4, 256>}]} {
    %cst = arith.constant 0.000000e+00 : f32
    %0 = vector.broadcast %cst : f32 to vector<16x512xf32>
    %c0 = arith.constant 0 : index
    %c0_0 = arith.constant 0 : index
    %1 = vector.load %arg7[%c0, %c0_0] : memref<16x512xf32, #tpu.memory_space<vmem>>, vector<16x512xf32>
    tpu.vector_store %arg7[%c0, %c0_0], %0 {strides = array<i32>} : memref<16x512xf32, #tpu.memory_space<vmem>>, vector<16x512xf32>,
    %cst_1 = arith.constant 0.000000e+00 : f32
    %2 = vector.broadcast %cst_1 : f32 to vector<16x512xf32>
    %c0_2 = arith.constant 0 : index
    %c0_3 = arith.constant 0 : index
    %3 = vector.load %arg8[%c0_2, %c0_3] : memref<16x512xf32, #tpu.memory_space<vmem>>, vector<16x512xf32>
    tpu.vector_store %arg8[%c0_2, %c0_3], %2 {strides = array<i32>} : memref<16x512xf32, #tpu.memory_space<vmem>>, vector<16x512xf32>,
    %4 = tpu.iota {dimensions = array<i32: 1>} : vector<1x256xi32>
    %c16_i32 = arith.constant 16 : i32
    %c0_i32 = arith.constant 0 : i32
    %5 = arith.cmpi eq, %c16_i32, %c0_i32 : i32
    %c1_i32 = arith.constant 1 : i32
    %6 = arith.select %5, %c1_i32, %c16_i32 : i32
    %7 = vector.broadcast %6 : i32 to vector<1x256xi32>
    %8 = arith.remsi %4, %7 : vector<1x256xi32>
    %c0_i32_4 = arith.constant 0 : i32
    %9 = vector.broadcast %c0_i32_4 : i32 to vector<1x256xi32>
    %10 = arith.cmpi ne, %8, %9 : vector<1x256xi32>
    %c0_i32_5 = arith.constant 0 : i32
    %11 = vector.broadcast %c0_i32_5 : i32 to vector<1x256xi32>
    %12 = arith.cmpi slt, %8, %11 : vector<1x256xi32>
    %c0_i32_6 = arith.constant 0 : i32
    %13 = arith.cmpi slt, %6, %c0_i32_6 : i32
    %14 = vector.broadcast %13 : i1 to vector<1x256xi1>
    %15 = vector.broadcast %14 : vector<1x256xi1> to vector<1x256xi1>
    %16 = arith.xori %12, %15 : vector<1x256xi1>
    %17 = arith.andi %16, %10 : vector<1x256xi1>
    %18 = vector.broadcast %6 : i32 to vector<1x256xi32>
    %19 = arith.addi %8, %18 : vector<1x256xi32>
    %20 = arith.select %17, %19, %8 : vector<1x256xi1>, vector<1x256xi32>
    %c1_i32_7 = arith.constant 1 : i32
    %21 = vector.broadcast %c1_i32_7 : i32 to vector<1x256xi32>
    %22 = arith.cmpi sge, %20, %21 : vector<1x256xi32>
    %c14_i32 = arith.constant 14 : i32
    %23 = vector.broadcast %c14_i32 : i32 to vector<1x256xi32>
    %24 = arith.cmpi sle, %20, %23 : vector<1x256xi32>
    %c0_i32_8 = arith.constant 0 : i32
    %c2_i32 = arith.constant 2 : i32
    %25 = arith.addi %c0_i32_8, %c2_i32 : i32
    %c1_i32_9 = arith.constant 1 : i32
    scf.for %arg10 = %c0_i32_8 to %25 step %c1_i32_9  : i32 {
      %26 = arith.index_cast %arg10 : i32 to index
      %c0_11 = arith.constant 0 : index
      %c0_12 = arith.constant 0 : index
      %27 = vector.load %arg1[%26, %c0_11, %c0_12] : memref<2x4x256xf32, #tpu.memory_space<vmem>>, vector<1x4x256xf32>
      %28 = vector.shape_cast %27 : vector<1x4x256xf32> to vector<4x256xf32>
      %c0_13 = arith.constant 0 : index
      %c128 = arith.constant 128 : index
      %29 = vector.load %arg7[%c0_13, %c128] : memref<16x512xf32, #tpu.memory_space<vmem>>, vector<4x256xf32>
      tpu.vector_store %arg7[%c0_13, %c128], %28 {strides = array<i32>} : memref<16x512xf32, #tpu.memory_space<vmem>>, vector<4x256xf32>,
      %c0_14 = arith.constant 0 : index
      %c111 = arith.constant 111 : index
      %30 = vector.load %arg7[%c0_14, %c111] : memref<16x512xf32, #tpu.memory_space<vmem>>, vector<16x256xf32>
      %cst_15 = arith.constant 0.000000e+00 : f32
      %31 = vector.shape_cast %22 : vector<1x256xi1> to vector<1x256xi1>
      %32 = vector.broadcast %31 : vector<1x256xi1> to vector<16x256xi1>
      %33 = vector.broadcast %cst_15 : f32 to vector<16x256xf32>
      %34 = arith.select %32, %30, %33 : vector<16x256xi1>, vector<16x256xf32>
      %35 = arith.truncf %34 : vector<16x256xf32> to vector<16x256xbf16>
      %c0_16 = arith.constant 0 : index
      %c0_17 = arith.constant 0 : index
      %36 = vector.load %arg9[%c0_16, %c0_17] : memref<144x256xbf16, #tpu.memory_space<vmem>>, vector<16x256xbf16>
      tpu.vector_store %arg9[%c0_16, %c0_17], %35 {strides = array<i32>} : memref<144x256xbf16, #tpu.memory_space<vmem>>, vector<16x256xbf16>,
      %c0_18 = arith.constant 0 : index
      %c112 = arith.constant 112 : index
      %37 = vector.load %arg7[%c0_18, %c112] : memref<16x512xf32, #tpu.memory_space<vmem>>, vector<16x256xf32>
      %38 = arith.truncf %37 : vector<16x256xf32> to vector<16x256xbf16>
      %c16 = arith.constant 16 : index
      %c0_19 = arith.constant 0 : index
      %39 = vector.load %arg9[%c16, %c0_19] : memref<144x256xbf16, #tpu.memory_space<vmem>>, vector<16x256xbf16>
      tpu.vector_store %arg9[%c16, %c0_19], %38 {strides = array<i32>} : memref<144x256xbf16, #tpu.memory_space<vmem>>, vector<16x256xbf16>,
      %c0_20 = arith.constant 0 : index
      %c113 = arith.constant 113 : index
      %40 = vector.load %arg7[%c0_20, %c113] : memref<16x512xf32, #tpu.memory_space<vmem>>, vector<16x256xf32>
      %cst_21 = arith.constant 0.000000e+00 : f32
      %41 = vector.shape_cast %24 : vector<1x256xi1> to vector<1x256xi1>
      %42 = vector.broadcast %41 : vector<1x256xi1> to vector<16x256xi1>
      %43 = vector.broadcast %cst_21 : f32 to vector<16x256xf32>
      %44 = arith.select %42, %40, %43 : vector<16x256xi1>, vector<16x256xf32>
      %45 = arith.truncf %44 : vector<16x256xf32> to vector<16x256xbf16>
      %c32 = arith.constant 32 : index
      %c0_22 = arith.constant 0 : index
      %46 = vector.load %arg9[%c32, %c0_22] : memref<144x256xbf16, #tpu.memory_space<vmem>>, vector<16x256xbf16>
      tpu.vector_store %arg9[%c32, %c0_22], %45 {strides = array<i32>} : memref<144x256xbf16, #tpu.memory_space<vmem>>, vector<16x256xbf16>,
      %c0_23 = arith.constant 0 : index
      %c127 = arith.constant 127 : index
      %47 = vector.load %arg7[%c0_23, %c127] : memref<16x512xf32, #tpu.memory_space<vmem>>, vector<16x256xf32>
      %cst_24 = arith.constant 0.000000e+00 : f32
      %48 = vector.shape_cast %22 : vector<1x256xi1> to vector<1x256xi1>
      %49 = vector.broadcast %48 : vector<1x256xi1> to vector<16x256xi1>
      %50 = vector.broadcast %cst_24 : f32 to vector<16x256xf32>
      %51 = arith.select %49, %47, %50 : vector<16x256xi1>, vector<16x256xf32>
      %52 = arith.truncf %51 : vector<16x256xf32> to vector<16x256xbf16>
      %c48 = arith.constant 48 : index
      %c0_25 = arith.constant 0 : index
      %53 = vector.load %arg9[%c48, %c0_25] : memref<144x256xbf16, #tpu.memory_space<vmem>>, vector<16x256xbf16>
      tpu.vector_store %arg9[%c48, %c0_25], %52 {strides = array<i32>} : memref<144x256xbf16, #tpu.memory_space<vmem>>, vector<16x256xbf16>,
      %c0_26 = arith.constant 0 : index
      %c128_27 = arith.constant 128 : index
      %54 = vector.load %arg7[%c0_26, %c128_27] : memref<16x512xf32, #tpu.memory_space<vmem>>, vector<16x256xf32>
      %55 = arith.truncf %54 : vector<16x256xf32> to vector<16x256xbf16>
      %c64 = arith.constant 64 : index
      %c0_28 = arith.constant 0 : index
      %56 = vector.load %arg9[%c64, %c0_28] : memref<144x256xbf16, #tpu.memory_space<vmem>>, vector<16x256xbf16>
      tpu.vector_store %arg9[%c64, %c0_28], %55 {strides = array<i32>} : memref<144x256xbf16, #tpu.memory_space<vmem>>, vector<16x256xbf16>,
      %c0_29 = arith.constant 0 : index
      %c129 = arith.constant 129 : index
      %57 = vector.load %arg7[%c0_29, %c129] : memref<16x512xf32, #tpu.memory_space<vmem>>, vector<16x256xf32>
      %cst_30 = arith.constant 0.000000e+00 : f32
      %58 = vector.shape_cast %24 : vector<1x256xi1> to vector<1x256xi1>
      %59 = vector.broadcast %58 : vector<1x256xi1> to vector<16x256xi1>
      %60 = vector.broadcast %cst_30 : f32 to vector<16x256xf32>
      %61 = arith.select %59, %57, %60 : vector<16x256xi1>, vector<16x256xf32>
      %62 = arith.truncf %61 : vector<16x256xf32> to vector<16x256xbf16>
      %c80 = arith.constant 80 : index
      %c0_31 = arith.constant 0 : index
      %63 = vector.load %arg9[%c80, %c0_31] : memref<144x256xbf16, #tpu.memory_space<vmem>>, vector<16x256xbf16>
      tpu.vector_store %arg9[%c80, %c0_31], %62 {strides = array<i32>} : memref<144x256xbf16, #tpu.memory_space<vmem>>, vector<16x256xbf16>,
      %c0_32 = arith.constant 0 : index
      %c143 = arith.constant 143 : index
      %64 = vector.load %arg7[%c0_32, %c143] : memref<16x512xf32, #tpu.memory_space<vmem>>, vector<16x256xf32>
      %cst_33 = arith.constant 0.000000e+00 : f32
      %65 = vector.shape_cast %22 : vector<1x256xi1> to vector<1x256xi1>
      %66 = vector.broadcast %65 : vector<1x256xi1> to vector<16x256xi1>
      %67 = vector.broadcast %cst_33 : f32 to vector<16x256xf32>
      %68 = arith.select %66, %64, %67 : vector<16x256xi1>, vector<16x256xf32>
      %69 = arith.truncf %68 : vector<16x256xf32> to vector<16x256xbf16>
      %c96 = arith.constant 96 : index
      %c0_34 = arith.constant 0 : index
      %70 = vector.load %arg9[%c96, %c0_34] : memref<144x256xbf16, #tpu.memory_space<vmem>>, vector<16x256xbf16>
      tpu.vector_store %arg9[%c96, %c0_34], %69 {strides = array<i32>} : memref<144x256xbf16, #tpu.memory_space<vmem>>, vector<16x256xbf16>,
      %c0_35 = arith.constant 0 : index
      %c144 = arith.constant 144 : index
      %71 = vector.load %arg7[%c0_35, %c144] : memref<16x512xf32, #tpu.memory_space<vmem>>, vector<16x256xf32>
      %72 = arith.truncf %71 : vector<16x256xf32> to vector<16x256xbf16>
      %c112_36 = arith.constant 112 : index
      %c0_37 = arith.constant 0 : index
      %73 = vector.load %arg9[%c112_36, %c0_37] : memref<144x256xbf16, #tpu.memory_space<vmem>>, vector<16x256xbf16>
      tpu.vector_store %arg9[%c112_36, %c0_37], %72 {strides = array<i32>} : memref<144x256xbf16, #tpu.memory_space<vmem>>, vector<16x256xbf16>,
      %c0_38 = arith.constant 0 : index
      %c145 = arith.constant 145 : index
      %74 = vector.load %arg7[%c0_38, %c145] : memref<16x512xf32, #tpu.memory_space<vmem>>, vector<16x256xf32>
      %cst_39 = arith.constant 0.000000e+00 : f32
      %75 = vector.shape_cast %24 : vector<1x256xi1> to vector<1x256xi1>
      %76 = vector.broadcast %75 : vector<1x256xi1> to vector<16x256xi1>
      %77 = vector.broadcast %cst_39 : f32 to vector<16x256xf32>
      %78 = arith.select %76, %74, %77 : vector<16x256xi1>, vector<16x256xf32>
      %79 = arith.truncf %78 : vector<16x256xf32> to vector<16x256xbf16>
      %c128_40 = arith.constant 128 : index
      %c0_41 = arith.constant 0 : index
      %80 = vector.load %arg9[%c128_40, %c0_41] : memref<144x256xbf16, #tpu.memory_space<vmem>>, vector<16x256xbf16>
      tpu.vector_store %arg9[%c128_40, %c0_41], %79 {strides = array<i32>} : memref<144x256xbf16, #tpu.memory_space<vmem>>, vector<16x256xbf16>,
      %c0_42 = arith.constant 0 : index
      %c0_43 = arith.constant 0 : index
      %81 = vector.load %arg2[%c0_42, %c0_43] : memref<4x144xbf16, #tpu.memory_space<vmem>>, vector<4x144xbf16>
      %c0_44 = arith.constant 0 : index
      %c0_45 = arith.constant 0 : index
      %82 = vector.load %arg9[%c0_44, %c0_45] : memref<144x256xbf16, #tpu.memory_space<vmem>>, vector<144x256xbf16>
      %cst_46 = arith.constant dense<0.000000e+00> : vector<4x256xf32>
      %83 = tpu.matmul %81, %82, %cst_46 {dimension_numbers = #tpu.dot_dimension_numbers<[1], [0], [0], [1], [0, 0, 1, 1], [], []>} : vector<4x144xbf16>, vector<144x256xbf16>, vector<4x256xf32> -> vector<4x256xf32>
      %c0_47 = arith.constant 0 : index
      %c0_48 = arith.constant 0 : index
      %84 = vector.load %arg3[%c0_47, %c0_48] : memref<4x1xf32, #tpu.memory_space<vmem>>, vector<4x1xf32>
      %85 = vector.broadcast %84 : vector<4x1xf32> to vector<4x256xf32>
      %86 = arith.addf %83, %85 : vector<4x256xf32>
      %cst_49 = arith.constant 0.000000e+00 : f32
      %87 = vector.broadcast %cst_49 : f32 to vector<4x256xf32>
      %88 = arith.maximumf %86, %87 : vector<4x256xf32>
      %c0_50 = arith.constant 0 : index
      %c128_51 = arith.constant 128 : index
      %89 = vector.load %arg8[%c0_50, %c128_51] : memref<16x512xf32, #tpu.memory_space<vmem>>, vector<4x256xf32>
      tpu.vector_store %arg8[%c0_50, %c128_51], %88 {strides = array<i32>} : memref<16x512xf32, #tpu.memory_space<vmem>>, vector<4x256xf32>,
      %c0_52 = arith.constant 0 : index
      %c111_53 = arith.constant 111 : index
      %90 = vector.load %arg8[%c0_52, %c111_53] : memref<16x512xf32, #tpu.memory_space<vmem>>, vector<16x256xf32>
      %cst_54 = arith.constant 0.000000e+00 : f32
      %91 = vector.shape_cast %22 : vector<1x256xi1> to vector<1x256xi1>
      %92 = vector.broadcast %91 : vector<1x256xi1> to vector<16x256xi1>
      %93 = vector.broadcast %cst_54 : f32 to vector<16x256xf32>
      %94 = arith.select %92, %90, %93 : vector<16x256xi1>, vector<16x256xf32>
      %95 = arith.truncf %94 : vector<16x256xf32> to vector<16x256xbf16>
      %c0_55 = arith.constant 0 : index
      %c0_56 = arith.constant 0 : index
      %96 = vector.load %arg9[%c0_55, %c0_56] : memref<144x256xbf16, #tpu.memory_space<vmem>>, vector<16x256xbf16>
      tpu.vector_store %arg9[%c0_55, %c0_56], %95 {strides = array<i32>} : memref<144x256xbf16, #tpu.memory_space<vmem>>, vector<16x256xbf16>,
      %c0_57 = arith.constant 0 : index
      %c112_58 = arith.constant 112 : index
      %97 = vector.load %arg8[%c0_57, %c112_58] : memref<16x512xf32, #tpu.memory_space<vmem>>, vector<16x256xf32>
      %98 = arith.truncf %97 : vector<16x256xf32> to vector<16x256xbf16>
      %c16_59 = arith.constant 16 : index
      %c0_60 = arith.constant 0 : index
      %99 = vector.load %arg9[%c16_59, %c0_60] : memref<144x256xbf16, #tpu.memory_space<vmem>>, vector<16x256xbf16>
      tpu.vector_store %arg9[%c16_59, %c0_60], %98 {strides = array<i32>} : memref<144x256xbf16, #tpu.memory_space<vmem>>, vector<16x256xbf16>,
      %c0_61 = arith.constant 0 : index
      %c113_62 = arith.constant 113 : index
      %100 = vector.load %arg8[%c0_61, %c113_62] : memref<16x512xf32, #tpu.memory_space<vmem>>, vector<16x256xf32>
      %cst_63 = arith.constant 0.000000e+00 : f32
      %101 = vector.shape_cast %24 : vector<1x256xi1> to vector<1x256xi1>
      %102 = vector.broadcast %101 : vector<1x256xi1> to vector<16x256xi1>
      %103 = vector.broadcast %cst_63 : f32 to vector<16x256xf32>
      %104 = arith.select %102, %100, %103 : vector<16x256xi1>, vector<16x256xf32>
      %105 = arith.truncf %104 : vector<16x256xf32> to vector<16x256xbf16>
      %c32_64 = arith.constant 32 : index
      %c0_65 = arith.constant 0 : index
      %106 = vector.load %arg9[%c32_64, %c0_65] : memref<144x256xbf16, #tpu.memory_space<vmem>>, vector<16x256xbf16>
      tpu.vector_store %arg9[%c32_64, %c0_65], %105 {strides = array<i32>} : memref<144x256xbf16, #tpu.memory_space<vmem>>, vector<16x256xbf16>,
      %c0_66 = arith.constant 0 : index
      %c127_67 = arith.constant 127 : index
      %107 = vector.load %arg8[%c0_66, %c127_67] : memref<16x512xf32, #tpu.memory_space<vmem>>, vector<16x256xf32>
      %cst_68 = arith.constant 0.000000e+00 : f32
      %108 = vector.shape_cast %22 : vector<1x256xi1> to vector<1x256xi1>
      %109 = vector.broadcast %108 : vector<1x256xi1> to vector<16x256xi1>
      %110 = vector.broadcast %cst_68 : f32 to vector<16x256xf32>
      %111 = arith.select %109, %107, %110 : vector<16x256xi1>, vector<16x256xf32>
      %112 = arith.truncf %111 : vector<16x256xf32> to vector<16x256xbf16>
      %c48_69 = arith.constant 48 : index
      %c0_70 = arith.constant 0 : index
      %113 = vector.load %arg9[%c48_69, %c0_70] : memref<144x256xbf16, #tpu.memory_space<vmem>>, vector<16x256xbf16>
      tpu.vector_store %arg9[%c48_69, %c0_70], %112 {strides = array<i32>} : memref<144x256xbf16, #tpu.memory_space<vmem>>, vector<16x256xbf16>,
      %c0_71 = arith.constant 0 : index
      %c128_72 = arith.constant 128 : index
      %114 = vector.load %arg8[%c0_71, %c128_72] : memref<16x512xf32, #tpu.memory_space<vmem>>, vector<16x256xf32>
      %115 = arith.truncf %114 : vector<16x256xf32> to vector<16x256xbf16>
      %c64_73 = arith.constant 64 : index
      %c0_74 = arith.constant 0 : index
      %116 = vector.load %arg9[%c64_73, %c0_74] : memref<144x256xbf16, #tpu.memory_space<vmem>>, vector<16x256xbf16>
      tpu.vector_store %arg9[%c64_73, %c0_74], %115 {strides = array<i32>} : memref<144x256xbf16, #tpu.memory_space<vmem>>, vector<16x256xbf16>,
      %c0_75 = arith.constant 0 : index
      %c129_76 = arith.constant 129 : index
      %117 = vector.load %arg8[%c0_75, %c129_76] : memref<16x512xf32, #tpu.memory_space<vmem>>, vector<16x256xf32>
      %cst_77 = arith.constant 0.000000e+00 : f32
      %118 = vector.shape_cast %24 : vector<1x256xi1> to vector<1x256xi1>
      %119 = vector.broadcast %118 : vector<1x256xi1> to vector<16x256xi1>
      %120 = vector.broadcast %cst_77 : f32 to vector<16x256xf32>
      %121 = arith.select %119, %117, %120 : vector<16x256xi1>, vector<16x256xf32>
      %122 = arith.truncf %121 : vector<16x256xf32> to vector<16x256xbf16>
      %c80_78 = arith.constant 80 : index
      %c0_79 = arith.constant 0 : index
      %123 = vector.load %arg9[%c80_78, %c0_79] : memref<144x256xbf16, #tpu.memory_space<vmem>>, vector<16x256xbf16>
      tpu.vector_store %arg9[%c80_78, %c0_79], %122 {strides = array<i32>} : memref<144x256xbf16, #tpu.memory_space<vmem>>, vector<16x256xbf16>,
      %c0_80 = arith.constant 0 : index
      %c143_81 = arith.constant 143 : index
      %124 = vector.load %arg8[%c0_80, %c143_81] : memref<16x512xf32, #tpu.memory_space<vmem>>, vector<16x256xf32>
      %cst_82 = arith.constant 0.000000e+00 : f32
      %125 = vector.shape_cast %22 : vector<1x256xi1> to vector<1x256xi1>
      %126 = vector.broadcast %125 : vector<1x256xi1> to vector<16x256xi1>
      %127 = vector.broadcast %cst_82 : f32 to vector<16x256xf32>
      %128 = arith.select %126, %124, %127 : vector<16x256xi1>, vector<16x256xf32>
      %129 = arith.truncf %128 : vector<16x256xf32> to vector<16x256xbf16>
      %c96_83 = arith.constant 96 : index
      %c0_84 = arith.constant 0 : index
      %130 = vector.load %arg9[%c96_83, %c0_84] : memref<144x256xbf16, #tpu.memory_space<vmem>>, vector<16x256xbf16>
      tpu.vector_store %arg9[%c96_83, %c0_84], %129 {strides = array<i32>} : memref<144x256xbf16, #tpu.memory_space<vmem>>, vector<16x256xbf16>,
      %c0_85 = arith.constant 0 : index
      %c144_86 = arith.constant 144 : index
      %131 = vector.load %arg8[%c0_85, %c144_86] : memref<16x512xf32, #tpu.memory_space<vmem>>, vector<16x256xf32>
      %132 = arith.truncf %131 : vector<16x256xf32> to vector<16x256xbf16>
      %c112_87 = arith.constant 112 : index
      %c0_88 = arith.constant 0 : index
      %133 = vector.load %arg9[%c112_87, %c0_88] : memref<144x256xbf16, #tpu.memory_space<vmem>>, vector<16x256xbf16>
      tpu.vector_store %arg9[%c112_87, %c0_88], %132 {strides = array<i32>} : memref<144x256xbf16, #tpu.memory_space<vmem>>, vector<16x256xbf16>,
      %c0_89 = arith.constant 0 : index
      %c145_90 = arith.constant 145 : index
      %134 = vector.load %arg8[%c0_89, %c145_90] : memref<16x512xf32, #tpu.memory_space<vmem>>, vector<16x256xf32>
      %cst_91 = arith.constant 0.000000e+00 : f32
      %135 = vector.shape_cast %24 : vector<1x256xi1> to vector<1x256xi1>
      %136 = vector.broadcast %135 : vector<1x256xi1> to vector<16x256xi1>
      %137 = vector.broadcast %cst_91 : f32 to vector<16x256xf32>
      %138 = arith.select %136, %134, %137 : vector<16x256xi1>, vector<16x256xf32>
      %139 = arith.truncf %138 : vector<16x256xf32> to vector<16x256xbf16>
      %c128_92 = arith.constant 128 : index
      %c0_93 = arith.constant 0 : index
      %140 = vector.load %arg9[%c128_92, %c0_93] : memref<144x256xbf16, #tpu.memory_space<vmem>>, vector<16x256xbf16>
      tpu.vector_store %arg9[%c128_92, %c0_93], %139 {strides = array<i32>} : memref<144x256xbf16, #tpu.memory_space<vmem>>, vector<16x256xbf16>,
      %c0_94 = arith.constant 0 : index
      %c0_95 = arith.constant 0 : index
      %141 = vector.load %arg4[%c0_94, %c0_95] : memref<4x144xbf16, #tpu.memory_space<vmem>>, vector<4x144xbf16>
      %c0_96 = arith.constant 0 : index
      %c0_97 = arith.constant 0 : index
      %142 = vector.load %arg9[%c0_96, %c0_97] : memref<144x256xbf16, #tpu.memory_space<vmem>>, vector<144x256xbf16>
      %cst_98 = arith.constant dense<0.000000e+00> : vector<4x256xf32>
      %143 = tpu.matmul %141, %142, %cst_98 {dimension_numbers = #tpu.dot_dimension_numbers<[1], [0], [0], [1], [0, 0, 1, 1], [], []>} : vector<4x144xbf16>, vector<144x256xbf16>, vector<4x256xf32> -> vector<4x256xf32>
      %c0_99 = arith.constant 0 : index
      %c0_100 = arith.constant 0 : index
      %144 = vector.load %arg5[%c0_99, %c0_100] : memref<4x1xf32, #tpu.memory_space<vmem>>, vector<4x1xf32>
      %145 = vector.broadcast %144 : vector<4x1xf32> to vector<4x256xf32>
      %146 = arith.addf %143, %145 : vector<4x256xf32>
      %c0_101 = arith.constant 0 : index
      %c128_102 = arith.constant 128 : index
      %147 = vector.load %arg7[%c0_101, %c128_102] : memref<16x512xf32, #tpu.memory_space<vmem>>, vector<4x256xf32>
      %148 = arith.addf %146, %147 : vector<4x256xf32>
      %cst_103 = arith.constant 0.000000e+00 : f32
      %149 = vector.broadcast %cst_103 : f32 to vector<4x256xf32>
      %150 = arith.maximumf %148, %149 : vector<4x256xf32>
      %151 = arith.index_cast %arg10 : i32 to index
      %c0_104 = arith.constant 0 : index
      %c0_105 = arith.constant 0 : index
      %152 = vector.load %arg6[%151, %c0_104, %c0_105] : memref<2x4x256xf32, #tpu.memory_space<vmem>>, vector<1x4x256xf32>
      %153 = vector.shape_cast %152 : vector<1x4x256xf32> to vector<4x256xf32>
      %154 = vector.shape_cast %150 : vector<4x256xf32> to vector<1x4x256xf32>
      tpu.vector_store %arg6[%151, %c0_104, %c0_105], %154 {strides = array<i32>} : memref<2x4x256xf32, #tpu.memory_space<vmem>>, vector<1x4x256xf32>,
    }
    %c2_i32_10 = arith.constant 2 : i32
    return
  }
  func.func @transform_0(%arg0: i32) -> (i32, i32, i32) {
    %c0_i32 = arith.constant 0 : i32
    %c0_i32_0 = arith.constant 0 : i32
    %c0_i32_1 = arith.constant 0 : i32
    return %arg0, %c0_i32, %c0_i32_0 : i32, i32, i32
  }
  func.func @transform_1(%arg0: i32) -> (i32, i32) {
    %c0_i32 = arith.constant 0 : i32
    %c0_i32_0 = arith.constant 0 : i32
    %c0_i32_1 = arith.constant 0 : i32
    return %c0_i32, %c0_i32_0 : i32, i32
  }
  func.func @transform_2(%arg0: i32) -> (i32, i32) {
    %c0_i32 = arith.constant 0 : i32
    %c0_i32_0 = arith.constant 0 : i32
    %c0_i32_1 = arith.constant 0 : i32
    return %c0_i32, %c0_i32_0 : i32, i32
  }
  func.func @transform_3(%arg0: i32) -> (i32, i32) {
    %c0_i32 = arith.constant 0 : i32
    %c0_i32_0 = arith.constant 0 : i32
    %c0_i32_1 = arith.constant 0 : i32
    return %c0_i32, %c0_i32_0 : i32, i32
  }
  func.func @transform_4(%arg0: i32) -> (i32, i32) {
    %c0_i32 = arith.constant 0 : i32
    %c0_i32_0 = arith.constant 0 : i32
    %c0_i32_1 = arith.constant 0 : i32
    return %c0_i32, %c0_i32_0 : i32, i32
  }
  func.func @transform_5(%arg0: i32) -> (i32, i32, i32) {
    %c0_i32 = arith.constant 0 : i32
    %c0_i32_0 = arith.constant 0 : i32
    %c0_i32_1 = arith.constant 0 : i32
    return %arg0, %c0_i32, %c0_i32_0 : i32, i32, i32
  }
}

</mosaic_0001>

<llo_original>
// kernel: basic_block_forward.1
$region0: #{basic_block_forward.1}
  #allocation0 [shape = 'u32[]', space=smem, size = 0x4, offset = 0x4, fixed_abs, tag = 'smem constant byte address 0x4 - core index']
  #allocation1 [shape = 'u32[144,128]{1,0:T(1,128)}', space=vmem, size = 0x12000, scoped, tag = 'internal scratch']
  #allocation2 [shape = 'f32[16,512]{1,0:T(8,128)}', space=vmem, size = 0x8000, scoped, tag = 'scratch operand']
  #allocation3 [shape = 'f32[16,512]{1,0:T(8,128)}', space=vmem, size = 0x8000, scoped, tag = 'scratch operand']
  #allocation4 [shape = 'bf16[144,256]{1,0:T(16,128)(2,1)}', space=vmem, size = 0x12000, scoped, tag = 'scratch operand']
  %s0 = inlined_call_operand.hbm [shape: f32[4,4,256], index: 0, kind: input, shape index: {}]
  %s1 = inlined_call_operand.hbm [shape: bf16[4,144], index: 1, kind: input, shape index: {}]
  %s2 = inlined_call_operand.hbm [shape: f32[4,1], index: 2, kind: input, shape index: {}]
  %s3 = inlined_call_operand.hbm [shape: bf16[4,144], index: 3, kind: input, shape index: {}]
  %s4 = inlined_call_operand.hbm [shape: f32[4,1], index: 4, kind: input, shape index: {}]
  %s5 = inlined_call_operand.hbm [shape: f32[4,4,256], index: 5, kind: output, shape index: {}]
  %s6 = sld [smem:[#allocation0]]
  $region80: #{basic_block_forward.1} parent=0
    _
  %s8 = ssub.s32 1, %s6
  %s9 = scalar_select 0, %s8, %s6
  $region1: #{basic_block_forward.1} parent=0
    #allocation5 [shape = 'u8[16384]{0}', space=vmem, size = 0x4000, scoped, tag = 'input window, operand 0']
    #allocation6 [shape = 's32[2]{0}', space=sflag, size = 0x8, scoped, tag = 'scoped memory for basic_block_forward.1']
    #allocation7 [shape = 's32[2]{0}', space=sflag, size = 0x8, scoped, tag = 'scoped memory for basic_block_forward.1']
    #allocation8 [shape = 'u8[2048]{0}', space=vmem, size = 0x800, scoped, tag = 'input window, operand 1, single buffered']
    #allocation9 [shape = 's32[1]{0}', space=sflag, size = 0x4, scoped, tag = 'scoped memory for basic_block_forward.1']
    #allocation10 [shape = 'u8[2048]{0}', space=vmem, size = 0x800, scoped, tag = 'input window, operand 2, single buffered']
    #allocation11 [shape = 'u8[2048]{0}', space=vmem, size = 0x800, scoped, tag = 'input window, operand 3, single buffered']
    #allocation12 [shape = 's32[1]{0}', space=sflag, size = 0x4, scoped, tag = 'scoped memory for basic_block_forward.1']
    #allocation13 [shape = 'u8[2048]{0}', space=vmem, size = 0x800, scoped, tag = 'input window, operand 4, single buffered']
    #allocation14 [shape = 'u8[16384]{0}', space=vmem, size = 0x4000, scoped, tag = 'output window, operand 0']
    %10 = vsyncpa [#allocation6], 0
    %s11 = scalar_lea.sflag [#allocation6], 1
    %12 = vsyncpa %s11, 0
    %13 = vsyncpa [#allocation9], 0
    %14 = vsyncpa [#allocation12], 0
    %15 = vsyncpa [#allocation7], 0
    %s16 = scalar_lea.sflag [#allocation7], 1
    %17 = vsyncpa %s16, 0
    loop: start=0, step=1, limit=4
    $region2: #{basic_block_forward.1} parent=1 // loop_pre_header
      _
    $region3: #{basic_block_forward.1} parent=1 // loop_header
      %s19 = sphi 0, %s23
      %p20 = scmp.ge.s32.totalorder %s19, 4
      %s29 = sphi 0, %s31
      %s32 = sphi 0, %s29
      %s33 = sphi 0, %s32
      %s49 = sphi 0, %s33
      %s53 = sphi 0, %s53
      %s55 = sphi 0, %s53
      %s56 = sphi 0, %s55
      %s70 = sphi 0, %s56
      %s74 = sphi 0, %s74
      %s76 = sphi 0, %s74
      %s77 = sphi 0, %s76
      %s91 = sphi 0, %s77
      %s95 = sphi 0, %s95
      %s97 = sphi 0, %s95
      %s98 = sphi 0, %s97
      %s112 = sphi 0, %s98
      %s116 = sphi 0, %s116
      %s118 = sphi 0, %s116
      %s119 = sphi 0, %s118
      %s133 = sphi 0, %s119
      %s139 = sphi 0, %s141
      %s142 = sphi 0, %s139
      %s143 = sphi 0, %s142
      %s159 = sphi 0, %s143
    $region4: #{basic_block_forward.1} parent=1 // loop_header_branch
      %22 = sbr.rel (%p20) target = $region8
    $region5: #{basic_block_forward.1} parent=1 // loop_body
      %s24 = ssub.s32 %s19, 1
      %s25 = ssub.s32 %s19, 2
      %s26 = sadd.s32 %s19, 1
      %s27 = ssub.s32 %s19, %s26
      %p28 = scmp.eq.s32.totalorder %s27, 0
      %s30 = sadd.s32 %s29, 1
      %s31 = scalar_select %p28, %s29, %s30
      %p34 = pneg %p28
      %p35 = scmp.eq.s32.totalorder %s19, 1
      %p36 = por %p34, %p35
      %p37 = scmp.ne.s32.totalorder %s29, %s32
      %p38 = scmp.eq.s32.totalorder %s19, 0
      %p39 = por %p37, %p38
      %p40 = scmp.ne.s32.totalorder %s29, %s32
      %p41 = scmp.eq.s32.totalorder %s24, 1
      %p42 = por %p40, %p41
      %p43 = scmp.ne.s32.totalorder %s32, %s33
      %p44 = scmp.eq.s32.totalorder %s24, 0
      %p45 = por %p43, %p44
      %p46 = scmp.ne.s32.totalorder %s32, %s33
      %p47 = scmp.eq.s32.totalorder %s25, 1
      %p48 = por %p46, %p47
      %p50 = scmp.ne.s32.totalorder %s33, %s49
      %p51 = scmp.eq.s32.totalorder %s25, 0
      %p52 = por %p50, %p51
      %s54 = sadd.s32 %s53, 1
      %p57 = scmp.eq.s32.totalorder %s19, 1
      %p58 = scmp.ne.s32.totalorder %s53, %s55
      %p59 = scmp.eq.s32.totalorder %s19, 0
      %p60 = por %p58, %p59
      %p61 = scmp.ne.s32.totalorder %s53, %s55
      %p62 = scmp.eq.s32.totalorder %s24, 1
      %p63 = por %p61, %p62
      %p64 = scmp.ne.s32.totalorder %s55, %s56
      %p65 = scmp.eq.s32.totalorder %s24, 0
      %p66 = por %p64, %p65
      %p67 = scmp.ne.s32.totalorder %s55, %s56
      %p68 = scmp.eq.s32.totalorder %s25, 1
      %p69 = por %p67, %p68
      %p71 = scmp.ne.s32.totalorder %s56, %s70
      %p72 = scmp.eq.s32.totalorder %s25, 0
      %p73 = por %p71, %p72
      %s75 = sadd.s32 %s74, 1
      %p78 = scmp.eq.s32.totalorder %s19, 1
      %p79 = scmp.ne.s32.totalorder %s74, %s76
      %p80 = scmp.eq.s32.totalorder %s19, 0
      %p81 = por %p79, %p80
      %p82 = scmp.ne.s32.totalorder %s74, %s76
      %p83 = scmp.eq.s32.totalorder %s24, 1
      %p84 = por %p82, %p83
      %p85 = scmp.ne.s32.totalorder %s76, %s77
      %p86 = scmp.eq.s32.totalorder %s24, 0
      %p87 = por %p85, %p86
      %p88 = scmp.ne.s32.totalorder %s76, %s77
      %p89 = scmp.eq.s32.totalorder %s25, 1
      %p90 = por %p88, %p89
      %p92 = scmp.ne.s32.totalorder %s77, %s91
      %p93 = scmp.eq.s32.totalorder %s25, 0
      %p94 = por %p92, %p93
      %s96 = sadd.s32 %s95, 1
      %p99 = scmp.eq.s32.totalorder %s19, 1
      %p100 = scmp.ne.s32.totalorder %s95, %s97
      %p101 = scmp.eq.s32.totalorder %s19, 0
      %p102 = por %p100, %p101
      %p103 = scmp.ne.s32.totalorder %s95, %s97
      %p104 = scmp.eq.s32.totalorder %s24, 1
      %p105 = por %p103, %p104
      %p106 = scmp.ne.s32.totalorder %s97, %s98
      %p107 = scmp.eq.s32.totalorder %s24, 0
      %p108 = por %p106, %p107
      %p109 = scmp.ne.s32.totalorder %s97, %s98
      %p110 = scmp.eq.s32.totalorder %s25, 1
      %p111 = por %p109, %p110
      %p113 = scmp.ne.s32.totalorder %s98, %s112
      %p114 = scmp.eq.s32.totalorder %s25, 0
      %p115 = por %p113, %p114
      %s117 = sadd.s32 %s116, 1
      %p120 = scmp.eq.s32.totalorder %s19, 1
      %p121 = scmp.ne.s32.totalorder %s116, %s118
      %p122 = scmp.eq.s32.totalorder %s19, 0
      %p123 = por %p121, %p122
      %p124 = scmp.ne.s32.totalorder %s116, %s118
      %p125 = scmp.eq.s32.totalorder %s24, 1
      %p126 = por %p124, %p125
      %p127 = scmp.ne.s32.totalorder %s118, %s119
      %p128 = scmp.eq.s32.totalorder %s24, 0
      %p129 = por %p127, %p128
      %p130 = scmp.ne.s32.totalorder %s118, %s119
      %p131 = scmp.eq.s32.totalorder %s25, 1
      %p132 = por %p130, %p131
      %p134 = scmp.ne.s32.totalorder %s119, %s133
      %p135 = scmp.eq.s32.totalorder %s25, 0
      %p136 = por %p134, %p135
      %s137 = ssub.s32 %s19, %s26
      %p138 = scmp.eq.s32.totalorder %s137, 0
      %s140 = sadd.s32 %s139, 1
      %s141 = scalar_select %p138, %s139, %s140
      %p144 = pneg %p138
      %p145 = scmp.eq.s32.totalorder %s19, 1
      %p146 = por %p144, %p145
      %p147 = scmp.ne.s32.totalorder %s139, %s142
      %p148 = scmp.eq.s32.totalorder %s19, 0
      %p149 = por %p147, %p148
      %p150 = scmp.ne.s32.totalorder %s139, %s142
      %p151 = scmp.eq.s32.totalorder %s24, 1
      %p152 = por %p150, %p151
      %p153 = scmp.ne.s32.totalorder %s142, %s143
      %p154 = scmp.eq.s32.totalorder %s24, 0
      %p155 = por %p153, %p154
      %p156 = scmp.ne.s32.totalorder %s142, %s143
      %p157 = scmp.eq.s32.totalorder %s25, 1
      %p158 = por %p156, %p157
      %p160 = scmp.ne.s32.totalorder %s143, %s159
      %p161 = scmp.eq.s32.totalorder %s25, 0
      %p162 = por %p160, %p161
      %p163 = scmp.le.s32.totalorder 1, %s19
      %p164 = scmp.lt.s32.totalorder %s19, 3
      %p165 = pnand %p163, %p164
      %p166 = pneg %p165
      // Predicated region
      $region9: #{basic_block_forward.1} parent=5 // pred_check
        _
      $region10: #{basic_block_forward.1} parent=5 // pred_check_branch
        %168 = sbr.rel (%p165) target = $region12
      $region11: #{basic_block_forward.1} parent=5 // pred_region
        %s169 = ssub.s32 %s19, 1
        // Predicated region
        $region13: #{basic_block_forward.1} parent=11 // pred_check
          %p170 = pneg %p66
        $region14: #{basic_block_forward.1} parent=11 // pred_check_branch
          %172 = sbr.rel (%p170) target = $region16
        $region15: #{basic_block_forward.1} parent=11 // pred_region
          %s174 = ssub.s32 64, 64
          %175 = vsyncadd [#allocation9], %s174
          %s177 = sshll.u32 [#allocation8], 4
          %s178 = int_to_ptr.vmem [resolvable:$true] %s177
          %180 = dma.hbm_to_vmem [thread:$0]  %s1, 64, %s178, [#allocation9]
        $region16: #{basic_block_forward.1} parent=11 // pred_fallthru
          _
        // Predicated region
        $region17: #{basic_block_forward.1} parent=11 // pred_check
          %p181 = pneg %p87
        $region18: #{basic_block_forward.1} parent=11 // pred_check_branch
          %183 = sbr.rel (%p181) target = $region20
        $region19: #{basic_block_forward.1} parent=11 // pred_region
          %s185 = ssub.s32 64, 64
          %186 = vsyncadd [#allocation9], %s185
          %s188 = sshll.u32 [#allocation10], 4
          %s189 = int_to_ptr.vmem [resolvable:$true] %s188
          %191 = dma.hbm_to_vmem [thread:$0]  %s2, 64, %s189, [#allocation9]
        $region20: #{basic_block_forward.1} parent=11 // pred_fallthru
          _
        // Predicated region
        $region21: #{basic_block_forward.1} parent=11 // pred_check
          %p192 = pneg %p108
        $region22: #{basic_block_forward.1} parent=11 // pred_check_branch
          %194 = sbr.rel (%p192) target = $region24
        $region23: #{basic_block_forward.1} parent=11 // pred_region
          %s196 = ssub.s32 64, 64
          %197 = vsyncadd [#allocation12], %s196
          %s199 = sshll.u32 [#allocation11], 4
          %s200 = int_to_ptr.vmem [resolvable:$true] %s199
          %202 = dma.hbm_to_vmem [thread:$0]  %s3, 64, %s200, [#allocation12]
        $region24: #{basic_block_forward.1} parent=11 // pred_fallthru
          _
        // Predicated region
        $region25: #{basic_block_forward.1} parent=11 // pred_check
          %p203 = pneg %p129
        $region26: #{basic_block_forward.1} parent=11 // pred_check_branch
          %205 = sbr.rel (%p203) target = $region28
        $region27: #{basic_block_forward.1} parent=11 // pred_region
          %s207 = ssub.s32 64, 64
          %208 = vsyncadd [#allocation12], %s207
          %s210 = sshll.u32 [#allocation13], 4
          %s211 = int_to_ptr.vmem [resolvable:$true] %s210
          %213 = dma.hbm_to_vmem [thread:$0]  %s4, 64, %s211, [#allocation12]
        $region28: #{basic_block_forward.1} parent=11 // pred_fallthru
          _
      $region12: #{basic_block_forward.1} parent=5 // pred_fallthru
        _
      %p214 = scmp.lt.s32.totalorder %s19, 2
      // Predicated region
      $region29: #{basic_block_forward.1} parent=5 // pred_check
        %p215 = pneg %p214
      $region30: #{basic_block_forward.1} parent=5 // pred_check_branch
        %217 = sbr.rel (%p215) target = $region32
      $region31: #{basic_block_forward.1} parent=5 // pred_region
        // Predicated region
        $region33: #{basic_block_forward.1} parent=31 // pred_check
          %p218 = pneg %p39
        $region34: #{basic_block_forward.1} parent=31 // pred_check_branch
          %220 = sbr.rel (%p218) target = $region36
        $region35: #{basic_block_forward.1} parent=31 // pred_region
          %s221 = sand.u32 %s29, 1
          %s222 = scalar_lea.sflag [#allocation6], %s221
          %s223 = sand.u32 %s29, 1
          %s224 = smul.addr %s223, 16
          %s225 = scalar_lea.vmem [#allocation5], %s224
          %s226 = smul.u32 2, %s19
          %s228 = ssub.s32 256, 256
          %229 = vsyncadd %s222, %s228
          %s230 = smul.addr %s226, 2
          %s231 = smul.addr %s230, 64
          %s232 = scalar_lea.hbm %s0, %s231
          %s233 = sshll.u32 %s225, 4
          %s234 = int_to_ptr.vmem [resolvable:$true] %s233
          %239 = dma.hbm_to_vmem [thread:$0]  %s232, 256, %s234, %s222, 128, 128, 8
        $region36: #{basic_block_forward.1} parent=31 // pred_fallthru
          _
      $region32: #{basic_block_forward.1} parent=5 // pred_fallthru
        _
      %p240 = scmp.le.s32.totalorder 1, %s19
      %p241 = scmp.lt.s32.totalorder %s19, 3
      %p242 = pnand %p240, %p241
      %p243 = pneg %p242
      // Predicated region
      $region37: #{basic_block_forward.1} parent=5 // pred_check
        _
      $region38: #{basic_block_forward.1} parent=5 // pred_check_branch
        %245 = sbr.rel (%p242) target = $region40
      $region39: #{basic_block_forward.1} parent=5 // pred_region
        %s246 = ssub.s32 %s19, 1
        %s247 = sand.u32 %s32, 1
        %s248 = scalar_lea.sflag [#allocation6], %s247
        %s249 = sand.u32 %s32, 1
        %s250 = smul.addr %s249, 16
        %s251 = scalar_lea.vmem [#allocation5], %s250
        // Predicated region
        $region41: #{basic_block_forward.1} parent=39 // pred_check
          %p252 = pneg %p45
        $region42: #{basic_block_forward.1} parent=39 // pred_check_branch
          %254 = sbr.rel (%p252) target = $region44
        $region43: #{basic_block_forward.1} parent=39 // pred_region
          %255 = dma.done %s248, 256
        $region44: #{basic_block_forward.1} parent=39 // pred_fallthru
          _
        // Predicated region
        $region45: #{basic_block_forward.1} parent=39 // pred_check
          %p256 = pneg %p66
        $region46: #{basic_block_forward.1} parent=39 // pred_check_branch
          %258 = sbr.rel (%p256) target = $region48
        $region47: #{basic_block_forward.1} parent=39 // pred_region
          %259 = dma.done [#allocation9], 64
        $region48: #{basic_block_forward.1} parent=39 // pred_fallthru
          _
        // Predicated region
        $region49: #{basic_block_forward.1} parent=39 // pred_check
          %p260 = pneg %p87
        $region50: #{basic_block_forward.1} parent=39 // pred_check_branch
          %262 = sbr.rel (%p260) target = $region52
        $region51: #{basic_block_forward.1} parent=39 // pred_region
          %263 = dma.done [#allocation9], 64
        $region52: #{basic_block_forward.1} parent=39 // pred_fallthru
          _
        // Predicated region
        $region53: #{basic_block_forward.1} parent=39 // pred_check
          %p264 = pneg %p108
        $region54: #{basic_block_forward.1} parent=39 // pred_check_branch
          %266 = sbr.rel (%p264) target = $region56
        $region55: #{basic_block_forward.1} parent=39 // pred_region
          %267 = dma.done [#allocation12], 64
        $region56: #{basic_block_forward.1} parent=39 // pred_fallthru
          _
        // Predicated region
        $region57: #{basic_block_forward.1} parent=39 // pred_check
          %p268 = pneg %p129
        $region58: #{basic_block_forward.1} parent=39 // pred_check_branch
          %270 = sbr.rel (%p268) target = $region60
        $region59: #{basic_block_forward.1} parent=39 // pred_region
          %271 = dma.done [#allocation12], 64
        $region60: #{basic_block_forward.1} parent=39 // pred_fallthru
          _
        %s272 = sand.u32 %s32, 1
        %s273 = scalar_lea.sflag [#allocation6], %s272
        %s274 = sand.u32 %s32, 1
        %s275 = smul.addr %s274, 16
        %s276 = scalar_lea.vmem [#allocation5], %s275
        %p277 = pneg %p45
        %p278 = pneg %p42
        %p279 = pneg %p66
        %p280 = pneg %p63
        %p281 = pneg %p87
        %p282 = pneg %p84
        %p283 = pneg %p108
        %p284 = pneg %p105
        %p285 = pneg %p129
        %p286 = pneg %p126
        %p287 = pneg %p155
        %p288 = pneg %p152
        %s289 = sand.u32 %s142, 1
        %s290 = scalar_lea.sflag [#allocation7], %s289
        %s291 = sand.u32 %s142, 1
        %s292 = smul.addr %s291, 16
        %s293 = scalar_lea.vmem [#allocation14], %s292
        %s294 = smul.u32 2, %s24
        %s295 = smul.u32 2, %s24
        %297 = vst [vmem:[#allocation2] sm:$0xff] 0.0
        %298 = vst [vmem:[#allocation2 + $0x8] sm:$0xff] 0.0
        %299 = vst [vmem:[#allocation2 + $0x10] sm:$0xff] 0.0
        %300 = vst [vmem:[#allocation2 + $0x18] sm:$0xff] 0.0
        %301 = vst [vmem:[#allocation2 + $0x20] sm:$0xff] 0.0
        %302 = vst [vmem:[#allocation2 + $0x28] sm:$0xff] 0.0
        %303 = vst [vmem:[#allocation2 + $0x30] sm:$0xff] 0.0
        %304 = vst [vmem:[#allocation2 + $0x38] sm:$0xff] 0.0
        %305 = vst [vmem:[#allocation3] sm:$0xff] 0.0
        %306 = vst [vmem:[#allocation3 + $0x8] sm:$0xff] 0.0
        %307 = vst [vmem:[#allocation3 + $0x10] sm:$0xff] 0.0
        %308 = vst [vmem:[#allocation3 + $0x18] sm:$0xff] 0.0
        %309 = vst [vmem:[#allocation3 + $0x20] sm:$0xff] 0.0
        %310 = vst [vmem:[#allocation3 + $0x28] sm:$0xff] 0.0
        %311 = vst [vmem:[#allocation3 + $0x30] sm:$0xff] 0.0
        %312 = vst [vmem:[#allocation3 + $0x38] sm:$0xff] 0.0
        %v313 = vlaneseq
        %v314 = vand.u32 %v313, 127
        %v315 = vadd.s32 %v314, 128
        %vm316 = vcmp.lt.s32.totalorder %v314, 0
        %v317 = vsub.s32 0, %v314
        %v318 = vsel %vm316, %v317, %v314
        %v319 = vshrl.u32 %v318, 4
        %v320 = vand.u32 %v318, 15
        %v321 = vsub.s32 0, %v320
        %v322 = vsel %vm316, %v321, %v320
        %vm323 = vcmp.lt.s32.totalorder %v315, 0
        %v324 = vsub.s32 0, %v315
        %v325 = vsel %vm323, %v324, %v315
        %v326 = vshrl.u32 %v325, 4
        %v327 = vand.u32 %v325, 15
        %v328 = vsub.s32 0, %v327
        %v329 = vsel %vm323, %v328, %v327
        %vm330 = vcmp.ne.s32.totalorder %v322, 0
        %vm331 = vcmp.ne.s32.totalorder %v329, 0
        %vm332 = vcmp.lt.s32.totalorder %v322, 0
        %vm333 = vcmp.lt.s32.totalorder %v329, 0
        %vm334 = vmand %vm332, %vm330
        %vm335 = vmand %vm333, %vm331
        %v336 = vadd.s32 %v322, 16
        %v337 = vadd.s32 %v329, 16
        %v338 = vsel %vm334, %v336, %v322
        %v339 = vsel %vm335, %v337, %v329
        %vm340 = vcmp.ge.s32.totalorder %v338, 1
        %vm341 = vcmp.ge.s32.totalorder %v339, 1
        %vm342 = vcmp.le.s32.totalorder %v338, 14
        %vm343 = vcmp.le.s32.totalorder %v339, 14
        loop: start=0, step=1, limit=2
        $region61: #{basic_block_forward.1} parent=39 // loop_pre_header
          _
        $region62: #{basic_block_forward.1} parent=39 // loop_header
          %s345 = sphi 0, %s349
          %p346 = scmp.ge.s32.totalorder %s345, 2
        $region63: #{basic_block_forward.1} parent=39 // loop_header_branch
          %348 = sbr.rel (%p346) target = $region67
        $region64: #{basic_block_forward.1} parent=39 // loop_body
          %s350 = smul.u32 %s345, 2
          %s351 = smul.addr %s350, 4
          %s352 = scalar_lea.vmem %s251, %s351 [#allocation5]
          %v353 = vld [vmem:[%s352] sm:$0xff]
          %v355 = vcombine.high %v353, %v353
          %357 = vst [vmem:[#allocation2 + $0x8] sm:$0xf] %v353
          %358 = vst [vmem:[#allocation2 + $0x10] sm:$0xf] %v355
          %v359 = vld [vmem:[#allocation2] sm:$0xff]
          %v360 = vld [vmem:[#allocation2 + $0x8] sm:$0xff]
          %v361 = vld [vmem:[#allocation2 + $0x10] sm:$0xff]
          %v362 = vld [vmem:[#allocation2 + $0x20] sm:$0xff]
          %v363 = vld [vmem:[#allocation2 + $0x28] sm:$0xff]
          %v364 = vld [vmem:[#allocation2 + $0x30] sm:$0xff]
          %v365 = vsel %vm340, 1, 0
          %v366 = vsel %vm341, 1, 0
          %vm367 = vcmp.eq.s32.totalorder %v365, 1
          %vm368 = vcmp.eq.s32.totalorder %v366, 1
          %375 = vrot.lane.b32.xlu0 %v359, 17
          %v376 = vpop.permute.xlu0 %375
          %377 = vrot.lane.b32.xlu0 %v360, 17
          %v378 = vpop.permute.xlu0 %377
          %379 = vrot.lane.b32.xlu0 %v361, 17
          %v380 = vpop.permute.xlu0 %379
          %381 = vrot.lane.b32.xlu0 %v362, 17
          %v382 = vpop.permute.xlu0 %381
          %383 = vrot.lane.b32.xlu0 %v363, 17
          %v384 = vpop.permute.xlu0 %383
          %385 = vrot.lane.b32.xlu0 %v364, 17
          %v386 = vpop.permute.xlu0 %385
          %vm387 = vcmask 138240
          %v388 = vsel %vm387, %v376, %v378
          %v389 = vsel %vm387, %v378, %v380
          %v390 = vsel %vm387, %v382, %v384
          %v391 = vsel %vm387, %v384, %v386
          %v396 = vsel %vm367, %v388, 0.0
          %v397 = vsel %vm368, %v389, 0.0
          %v398 = vsel %vm367, %v390, 0.0
          %v399 = vsel %vm368, %v391, 0.0
          %v400 = vpack.c.bf16 %v398, %v396
          %v401 = vpack.c.bf16 %v399, %v397
          %402 = vst [vmem:[#allocation4] sm:$0xff] %v400
          %403 = vst [vmem:[#allocation4 + $0x8] sm:$0xff] %v401
          %v404 = vld [vmem:[#allocation2] sm:$0xff]
          %v405 = vld [vmem:[#allocation2 + $0x8] sm:$0xff]
          %v406 = vld [vmem:[#allocation2 + $0x10] sm:$0xff]
          %v407 = vld [vmem:[#allocation2 + $0x20] sm:$0xff]
          %v408 = vld [vmem:[#allocation2 + $0x28] sm:$0xff]
          %v409 = vld [vmem:[#allocation2 + $0x30] sm:$0xff]
          %v410 = vpack.c.bf16 %v407, %v404
          %v411 = vpack.c.bf16 %v408, %v405
          %v412 = vpack.c.bf16 %v409, %v406
          %416 = vrot.lane.b32.xlu0 %v410, 16
          %v417 = vpop.permute.xlu0 %416
          %418 = vrot.lane.b32.xlu0 %v411, 16
          %v419 = vpop.permute.xlu0 %418
          %420 = vrot.lane.b32.xlu0 %v412, 16
          %v421 = vpop.permute.xlu0 %420
          %vm422 = vcmask 130048
          %v423 = vsel %vm422, %v417, %v419
          %v424 = vsel %vm422, %v419, %v421
          %427 = vst [vmem:[#allocation4 + $0x10] sm:$0xff] %v423
          %428 = vst [vmem:[#allocation4 + $0x18] sm:$0xff] %v424
          %v429 = vld [vmem:[#allocation2] sm:$0xff]
          %v430 = vld [vmem:[#allocation2 + $0x8] sm:$0xff]
          %v431 = vld [vmem:[#allocation2 + $0x10] sm:$0xff]
          %v432 = vld [vmem:[#allocation2 + $0x20] sm:$0xff]
          %v433 = vld [vmem:[#allocation2 + $0x28] sm:$0xff]
          %v434 = vld [vmem:[#allocation2 + $0x30] sm:$0xff]
          %v435 = vsel %vm342, 1, 0
          %v436 = vsel %vm343, 1, 0
          %vm437 = vcmp.eq.s32.totalorder %v435, 1
          %vm438 = vcmp.eq.s32.totalorder %v436, 1
          %445 = vrot.lane.b32.xlu0 %v429, 15
          %v446 = vpop.permute.xlu0 %445
          %447 = vrot.lane.b32.xlu0 %v430, 15
          %v448 = vpop.permute.xlu0 %447
          %449 = vrot.lane.b32.xlu0 %v431, 15
          %v450 = vpop.permute.xlu0 %449
          %451 = vrot.lane.b32.xlu0 %v432, 15
          %v452 = vpop.permute.xlu0 %451
          %453 = vrot.lane.b32.xlu0 %v433, 15
          %v454 = vpop.permute.xlu0 %453
          %455 = vrot.lane.b32.xlu0 %v434, 15
          %v456 = vpop.permute.xlu0 %455
          %vm457 = vcmask 121856
          %v458 = vsel %vm457, %v446, %v448
          %v459 = vsel %vm457, %v448, %v450
          %v460 = vsel %vm457, %v452, %v454
          %v461 = vsel %vm457, %v454, %v456
          %v466 = vsel %vm437, %v458, 0.0
          %v467 = vsel %vm438, %v459, 0.0
          %v468 = vsel %vm437, %v460, 0.0
          %v469 = vsel %vm438, %v461, 0.0
          %v470 = vpack.c.bf16 %v468, %v466
          %v471 = vpack.c.bf16 %v469, %v467
          %472 = vst [vmem:[#allocation4 + $0x20] sm:$0xff] %v470
          %473 = vst [vmem:[#allocation4 + $0x28] sm:$0xff] %v471
          %v474 = vld [vmem:[#allocation2] sm:$0xff]
          %v475 = vld [vmem:[#allocation2 + $0x8] sm:$0xff]
          %v476 = vld [vmem:[#allocation2 + $0x10] sm:$0xff]
          %v477 = vld [vmem:[#allocation2 + $0x20] sm:$0xff]
          %v478 = vld [vmem:[#allocation2 + $0x28] sm:$0xff]
          %v479 = vld [vmem:[#allocation2 + $0x30] sm:$0xff]
          %486 = vrot.lane.b32.xlu0 %v474, 1
          %v487 = vpop.permute.xlu0 %486
          %488 = vrot.lane.b32.xlu0 %v475, 1
          %v489 = vpop.permute.xlu0 %488
          %490 = vrot.lane.b32.xlu0 %v476, 1
          %v491 = vpop.permute.xlu0 %490
          %492 = vrot.lane.b32.xlu0 %v477, 1
          %v493 = vpop.permute.xlu0 %492
          %494 = vrot.lane.b32.xlu0 %v478, 1
          %v495 = vpop.permute.xlu0 %494
          %496 = vrot.lane.b32.xlu0 %v479, 1
          %v497 = vpop.permute.xlu0 %496
          %vm498 = vcmask 7168
          %v499 = vsel %vm498, %v487, %v489
          %v500 = vsel %vm498, %v489, %v491
          %v501 = vsel %vm498, %v493, %v495
          %v502 = vsel %vm498, %v495, %v497
          %v507 = vsel %vm367, %v499, 0.0
          %v508 = vsel %vm368, %v500, 0.0
          %v509 = vsel %vm367, %v501, 0.0
          %v510 = vsel %vm368, %v502, 0.0
          %v511 = vpack.c.bf16 %v509, %v507
          %v512 = vpack.c.bf16 %v510, %v508
          %513 = vst [vmem:[#allocation4 + $0x30] sm:$0xff] %v511
          %514 = vst [vmem:[#allocation4 + $0x38] sm:$0xff] %v512
          %v515 = vld [vmem:[#allocation2 + $0x8] sm:$0xff]
          %v516 = vld [vmem:[#allocation2 + $0x10] sm:$0xff]
          %v517 = vld [vmem:[#allocation2 + $0x28] sm:$0xff]
          %v518 = vld [vmem:[#allocation2 + $0x30] sm:$0xff]
          %v519 = vpack.c.bf16 %v517, %v515
          %v520 = vpack.c.bf16 %v518, %v516
          %521 = vst [vmem:[#allocation4 + $0x40] sm:$0xff] %v519
          %522 = vst [vmem:[#allocation4 + $0x48] sm:$0xff] %v520
          %v523 = vld [vmem:[#allocation2 + $0x8] sm:$0xff]
          %v524 = vld [vmem:[#allocation2 + $0x10] sm:$0xff]
          %v525 = vld [vmem:[#allocation2 + $0x18] sm:$0xff]
          %v526 = vld [vmem:[#allocation2 + $0x28] sm:$0xff]
          %v527 = vld [vmem:[#allocation2 + $0x30] sm:$0xff]
          %v528 = vld [vmem:[#allocation2 + $0x38] sm:$0xff]
          %535 = vrot.lane.b32.xlu0 %v523, 127
          %v536 = vpop.permute.xlu0 %535
          %537 = vrot.lane.b32.xlu0 %v524, 127
          %v538 = vpop.permute.xlu0 %537
          %539 = vrot.lane.b32.xlu0 %v525, 127
          %v540 = vpop.permute.xlu0 %539
          %541 = vrot.lane.b32.xlu0 %v526, 127
          %v542 = vpop.permute.xlu0 %541
          %543 = vrot.lane.b32.xlu0 %v527, 127
          %v544 = vpop.permute.xlu0 %543
          %545 = vrot.lane.b32.xlu0 %v528, 127
          %v546 = vpop.permute.xlu0 %545
          %vm547 = vcmask 1039360
          %v548 = vsel %vm547, %v536, %v538
          %v549 = vsel %vm547, %v538, %v540
          %v550 = vsel %vm547, %v542, %v544
          %v551 = vsel %vm547, %v544, %v546
          %v556 = vsel %vm437, %v548, 0.0
          %v557 = vsel %vm438, %v549, 0.0
          %v558 = vsel %vm437, %v550, 0.0
          %v559 = vsel %vm438, %v551, 0.0
          %v560 = vpack.c.bf16 %v558, %v556
          %v561 = vpack.c.bf16 %v559, %v557
          %562 = vst [vmem:[#allocation4 + $0x50] sm:$0xff] %v560
          %563 = vst [vmem:[#allocation4 + $0x58] sm:$0xff] %v561
          %v564 = vld [vmem:[#allocation2 + $0x8] sm:$0xff]
          %v565 = vld [vmem:[#allocation2 + $0x10] sm:$0xff]
          %v566 = vld [vmem:[#allocation2 + $0x18] sm:$0xff]
          %v567 = vld [vmem:[#allocation2 + $0x28] sm:$0xff]
          %v568 = vld [vmem:[#allocation2 + $0x30] sm:$0xff]
          %v569 = vld [vmem:[#allocation2 + $0x38] sm:$0xff]
          %576 = vrot.lane.b32.xlu0 %v564, 113
          %v577 = vpop.permute.xlu0 %576
          %578 = vrot.lane.b32.xlu0 %v565, 113
          %v579 = vpop.permute.xlu0 %578
          %580 = vrot.lane.b32.xlu0 %v566, 113
          %v581 = vpop.permute.xlu0 %580
          %582 = vrot.lane.b32.xlu0 %v567, 113
          %v583 = vpop.permute.xlu0 %582
          %584 = vrot.lane.b32.xlu0 %v568, 113
          %v585 = vpop.permute.xlu0 %584
          %586 = vrot.lane.b32.xlu0 %v569, 113
          %v587 = vpop.permute.xlu0 %586
          %vm588 = vcmask 924672
          %v589 = vsel %vm588, %v577, %v579
          %v590 = vsel %vm588, %v579, %v581
          %v591 = vsel %vm588, %v583, %v585
          %v592 = vsel %vm588, %v585, %v587
          %v597 = vsel %vm367, %v589, 0.0
          %v598 = vsel %vm368, %v590, 0.0
          %v599 = vsel %vm367, %v591, 0.0
          %v600 = vsel %vm368, %v592, 0.0
          %v601 = vpack.c.bf16 %v599, %v597
          %v602 = vpack.c.bf16 %v600, %v598
          %603 = vst [vmem:[#allocation4 + $0x60] sm:$0xff] %v601
          %604 = vst [vmem:[#allocation4 + $0x68] sm:$0xff] %v602
          %v605 = vld [vmem:[#allocation2 + $0x8] sm:$0xff]
          %v606 = vld [vmem:[#allocation2 + $0x10] sm:$0xff]
          %v607 = vld [vmem:[#allocation2 + $0x18] sm:$0xff]
          %v608 = vld [vmem:[#allocation2 + $0x28] sm:$0xff]
          %v609 = vld [vmem:[#allocation2 + $0x30] sm:$0xff]
          %v610 = vld [vmem:[#allocation2 + $0x38] sm:$0xff]
          %v611 = vpack.c.bf16 %v608, %v605
          %v612 = vpack.c.bf16 %v609, %v606
          %v613 = vpack.c.bf16 %v610, %v607
          %617 = vrot.lane.b32.xlu0 %v611, 112
          %v618 = vpop.permute.xlu0 %617
          %619 = vrot.lane.b32.xlu0 %v612, 112
          %v620 = vpop.permute.xlu0 %619
          %621 = vrot.lane.b32.xlu0 %v613, 112
          %v622 = vpop.permute.xlu0 %621
          %vm623 = vcmask 916480
          %v624 = vsel %vm623, %v618, %v620
          %v625 = vsel %vm623, %v620, %v622
          %628 = vst [vmem:[#allocation4 + $0x70] sm:$0xff] %v624
          %629 = vst [vmem:[#allocation4 + $0x78] sm:$0xff] %v625
          %v630 = vld [vmem:[#allocation2 + $0x8] sm:$0xff]
          %v631 = vld [vmem:[#allocation2 + $0x10] sm:$0xff]
          %v632 = vld [vmem:[#allocation2 + $0x18] sm:$0xff]
          %v633 = vld [vmem:[#allocation2 + $0x28] sm:$0xff]
          %v634 = vld [vmem:[#allocation2 + $0x30] sm:$0xff]
          %v635 = vld [vmem:[#allocation2 + $0x38] sm:$0xff]
          %642 = vrot.lane.b32.xlu0 %v630, 111
          %v643 = vpop.permute.xlu0 %642
          %644 = vrot.lane.b32.xlu0 %v631, 111
          %v645 = vpop.permute.xlu0 %644
          %646 = vrot.lane.b32.xlu0 %v632, 111
          %v647 = vpop.permute.xlu0 %646
          %648 = vrot.lane.b32.xlu0 %v633, 111
          %v649 = vpop.permute.xlu0 %648
          %650 = vrot.lane.b32.xlu0 %v634, 111
          %v651 = vpop.permute.xlu0 %650
          %652 = vrot.lane.b32.xlu0 %v635, 111
          %v653 = vpop.permute.xlu0 %652
          %vm654 = vcmask 908288
          %v655 = vsel %vm654, %v643, %v645
          %v656 = vsel %vm654, %v645, %v647
          %v657 = vsel %vm654, %v649, %v651
          %v658 = vsel %vm654, %v651, %v653
          %v663 = vsel %vm437, %v655, 0.0
          %v664 = vsel %vm438, %v656, 0.0
          %v665 = vsel %vm437, %v657, 0.0
          %v666 = vsel %vm438, %v658, 0.0
          %v667 = vpack.c.bf16 %v665, %v663
          %v668 = vpack.c.bf16 %v666, %v664
          %669 = vst [vmem:[#allocation4 + $0x80] sm:$0xff] %v667
          %670 = vst [vmem:[#allocation4 + $0x88] sm:$0xff] %v668
          %v671 = vld [vmem:[#allocation8] sm:$0xf]
          %v672 = vld [vmem:[#allocation4] sm:$0xff]
          %v673 = vld [vmem:[#allocation4 + $0x8] sm:$0xff]
          %v674 = vld [vmem:[#allocation4 + $0x10] sm:$0xff]
          %v675 = vld [vmem:[#allocation4 + $0x18] sm:$0xff]
          %v676 = vld [vmem:[#allocation4 + $0x20] sm:$0xff]
          %v677 = vld [vmem:[#allocation4 + $0x28] sm:$0xff]
          %v678 = vld [vmem:[#allocation4 + $0x30] sm:$0xff]
          %v679 = vld [vmem:[#allocation4 + $0x38] sm:$0xff]
          %v680 = vld [vmem:[#allocation4 + $0x40] sm:$0xff]
          %v681 = vld [vmem:[#allocation4 + $0x48] sm:$0xff]
          %v682 = vld [vmem:[#allocation4 + $0x50] sm:$0xff]
          %v683 = vld [vmem:[#allocation4 + $0x58] sm:$0xff]
          %v684 = vld [vmem:[#allocation4 + $0x60] sm:$0xff]
          %v685 = vld [vmem:[#allocation4 + $0x68] sm:$0xff]
          %v686 = vld [vmem:[#allocation4 + $0x70] sm:$0xff]
          %v687 = vld [vmem:[#allocation4 + $0x78] sm:$0xff]
          %v688 = vld [vmem:[#allocation4 + $0x80] sm:$0xff]
          %v689 = vld [vmem:[#allocation4 + $0x88] sm:$0xff]
          %v690 = vld [vmem:[#allocation10] sm:$0xf]
          %692 = vset.pattern.permute.xlu0 0
          %693 = vperm.xlu0 %692, %v690
          %v694 = vpop.permute.xlu0 %693
          %v698 = vunpack.c.l.s4 1983009808
          %v699 = vunpack.c.0.s8 %v698
          %v700 = vlaneseq
          %v701 = vshrl.u32 %v700, 7
          %v702 = vsub.s32 %v699, %v701
          %v703 = vrot.slane %v671, %v702
          %v704 = vcombine.high %v703, %v703
          %vm706 = vcmask 130048
          %v708 = vsel %vm706, %v704, 0
          %710 = vmatprep.subr.bf16.mxu0 %v673
          %711 = vmatpush1.bf16.msra.mxu0 %v672
          %712 = vmatprep.subr.bf16.mxu0 %v675
          %713 = vmatpush1.bf16.msra.mxu0 %v674
          %714 = vmatprep.subr.bf16.mxu0 %v677
          %715 = vmatpush1.bf16.msra.mxu0 %v676
          %716 = vmatprep.subr.bf16.mxu0 %v679
          %717 = vmatpush1.bf16.msra.mxu0 %v678
          %718 = vmatprep.subr.bf16.mxu0 %v681
          %719 = vmatpush1.bf16.msra.mxu0 %v680
          %720 = vmatprep.subr.bf16.mxu0 %v683
          %721 = vmatpush1.bf16.msra.mxu0 %v682
          %722 = vmatprep.subr.bf16.mxu0 %v685
          %723 = vmatpush1.bf16.msra.mxu0 %v684
          %724 = vmatprep.subr.bf16.mxu0 %v687
          %725 = vmatpush1.bf16.msra.mxu0 %v686
          %726 = vmatprep.subr.bf16.mxu0 %v689
          %727 = vmatpush1.bf16.msra.mxu0 %v688
          %728 = vmatprep.subr.bf16.mxu0 0
          %729 = vmatpush1.bf16.msra.mxu0 0
          %730 = vmatprep.subr.bf16.mxu0 0
          %731 = vmatpush1.bf16.msra.mxu0 0
          %732 = vmatprep.subr.bf16.mxu0 0
          %733 = vmatpush1.bf16.msra.mxu0 0
          %734 = vmatprep.subr.bf16.mxu0 0
          %735 = vmatpush1.bf16.msra.mxu0 0
          %736 = vmatprep.subr.bf16.mxu0 0
          %737 = vmatpush1.bf16.msra.mxu0 0
          %738 = vmatprep.subr.bf16.mxu0 0
          %739 = vmatpush1.bf16.msra.mxu0 0
          %740 = vmatprep.subr.bf16.mxu0 0
          %741 = vmatpush1.bf16.msra.mxu0 0
          %742 = vmatprep.mubr.bf16.mxu0 %v708
          %743 = vmatmul.mubr.bf16.gmra.mrb[0].mxu0 %v703
          %v744 = vpop.f32.mrb[0].mxu0
          %v745 = vadd.f32 %v694, %v744
          %v746 = vpop.f32.mrb[0].mxu0
          %v747 = vadd.f32 %v694, %v746
          %v748 = vpop.f32.mrb[0].mxu0
          %v749 = vpop.f32.mrb[0].mxu0
          %750 = vdwg.mxu0
          %v751 = vmax.f32 %v745, 0.0
          %v752 = vmax.f32 %v747, 0.0
          %753 = vst [vmem:[#allocation3 + $0x8] sm:$0xf] %v751
          %754 = vst [vmem:[#allocation3 + $0x10] sm:$0xf] %v752
          %v755 = vld [vmem:[#allocation3] sm:$0xff]
          %v756 = vld [vmem:[#allocation3 + $0x8] sm:$0xff]
          %v757 = vld [vmem:[#allocation3 + $0x10] sm:$0xff]
          %v758 = vld [vmem:[#allocation3 + $0x20] sm:$0xff]
          %v759 = vld [vmem:[#allocation3 + $0x28] sm:$0xff]
          %v760 = vld [vmem:[#allocation3 + $0x30] sm:$0xff]
          %767 = vrot.lane.b32.xlu0 %v755, 17
          %v768 = vpop.permute.xlu0 %767
          %769 = vrot.lane.b32.xlu0 %v756, 17
          %v770 = vpop.permute.xlu0 %769
          %771 = vrot.lane.b32.xlu0 %v757, 17
          %v772 = vpop.permute.xlu0 %771
          %773 = vrot.lane.b32.xlu0 %v758, 17
          %v774 = vpop.permute.xlu0 %773
          %775 = vrot.lane.b32.xlu0 %v759, 17
          %v776 = vpop.permute.xlu0 %775
          %777 = vrot.lane.b32.xlu0 %v760, 17
          %v778 = vpop.permute.xlu0 %777
          %v779 = vsel %vm387, %v768, %v770
          %v780 = vsel %vm387, %v770, %v772
          %v781 = vsel %vm387, %v774, %v776
          %v782 = vsel %vm387, %v776, %v778
          %v787 = vsel %vm367, %v779, 0.0
          %v788 = vsel %vm368, %v780, 0.0
          %v789 = vsel %vm367, %v781, 0.0
          %v790 = vsel %vm368, %v782, 0.0
          %v791 = vpack.c.bf16 %v789, %v787
          %v792 = vpack.c.bf16 %v790, %v788
          %793 = vst [vmem:[#allocation4] sm:$0xff] %v791
          %794 = vst [vmem:[#allocation4 + $0x8] sm:$0xff] %v792
          %v795 = vld [vmem:[#allocation3] sm:$0xff]
          %v796 = vld [vmem:[#allocation3 + $0x8] sm:$0xff]
          %v797 = vld [vmem:[#allocation3 + $0x10] sm:$0xff]
          %v798 = vld [vmem:[#allocation3 + $0x20] sm:$0xff]
          %v799 = vld [vmem:[#allocation3 + $0x28] sm:$0xff]
          %v800 = vld [vmem:[#allocation3 + $0x30] sm:$0xff]
          %v801 = vpack.c.bf16 %v798, %v795
          %v802 = vpack.c.bf16 %v799, %v796
          %v803 = vpack.c.bf16 %v800, %v797
          %807 = vrot.lane.b32.xlu0 %v801, 16
          %v808 = vpop.permute.xlu0 %807
          %809 = vrot.lane.b32.xlu0 %v802, 16
          %v810 = vpop.permute.xlu0 %809
          %811 = vrot.lane.b32.xlu0 %v803, 16
          %v812 = vpop.permute.xlu0 %811
          %v813 = vsel %vm422, %v808, %v810
          %v814 = vsel %vm422, %v810, %v812
          %817 = vst [vmem:[#allocation4 + $0x10] sm:$0xff] %v813
          %818 = vst [vmem:[#allocation4 + $0x18] sm:$0xff] %v814
          %v819 = vld [vmem:[#allocation3] sm:$0xff]
          %v820 = vld [vmem:[#allocation3 + $0x8] sm:$0xff]
          %v821 = vld [vmem:[#allocation3 + $0x10] sm:$0xff]
          %v822 = vld [vmem:[#allocation3 + $0x20] sm:$0xff]
          %v823 = vld [vmem:[#allocation3 + $0x28] sm:$0xff]
          %v824 = vld [vmem:[#allocation3 + $0x30] sm:$0xff]
          %831 = vrot.lane.b32.xlu0 %v819, 15
          %v832 = vpop.permute.xlu0 %831
          %833 = vrot.lane.b32.xlu0 %v820, 15
          %v834 = vpop.permute.xlu0 %833
          %835 = vrot.lane.b32.xlu0 %v821, 15
          %v836 = vpop.permute.xlu0 %835
          %837 = vrot.lane.b32.xlu0 %v822, 15
          %v838 = vpop.permute.xlu0 %837
          %839 = vrot.lane.b32.xlu0 %v823, 15
          %v840 = vpop.permute.xlu0 %839
          %841 = vrot.lane.b32.xlu0 %v824, 15
          %v842 = vpop.permute.xlu0 %841
          %v843 = vsel %vm457, %v832, %v834
          %v844 = vsel %vm457, %v834, %v836
          %v845 = vsel %vm457, %v838, %v840
          %v846 = vsel %vm457, %v840, %v842
          %v851 = vsel %vm437, %v843, 0.0
          %v852 = vsel %vm438, %v844, 0.0
          %v853 = vsel %vm437, %v845, 0.0
          %v854 = vsel %vm438, %v846, 0.0
          %v855 = vpack.c.bf16 %v853, %v851
          %v856 = vpack.c.bf16 %v854, %v852
          %857 = vst [vmem:[#allocation4 + $0x20] sm:$0xff] %v855
          %858 = vst [vmem:[#allocation4 + $0x28] sm:$0xff] %v856
          %v859 = vld [vmem:[#allocation3] sm:$0xff]
          %v860 = vld [vmem:[#allocation3 + $0x8] sm:$0xff]
          %v861 = vld [vmem:[#allocation3 + $0x10] sm:$0xff]
          %v862 = vld [vmem:[#allocation3 + $0x20] sm:$0xff]
          %v863 = vld [vmem:[#allocation3 + $0x28] sm:$0xff]
          %v864 = vld [vmem:[#allocation3 + $0x30] sm:$0xff]
          %871 = vrot.lane.b32.xlu0 %v859, 1
          %v872 = vpop.permute.xlu0 %871
          %873 = vrot.lane.b32.xlu0 %v860, 1
          %v874 = vpop.permute.xlu0 %873
          %875 = vrot.lane.b32.xlu0 %v861, 1
          %v876 = vpop.permute.xlu0 %875
          %877 = vrot.lane.b32.xlu0 %v862, 1
          %v878 = vpop.permute.xlu0 %877
          %879 = vrot.lane.b32.xlu0 %v863, 1
          %v880 = vpop.permute.xlu0 %879
          %881 = vrot.lane.b32.xlu0 %v864, 1
          %v882 = vpop.permute.xlu0 %881
          %v883 = vsel %vm498, %v872, %v874
          %v884 = vsel %vm498, %v874, %v876
          %v885 = vsel %vm498, %v878, %v880
          %v886 = vsel %vm498, %v880, %v882
          %v891 = vsel %vm367, %v883, 0.0
          %v892 = vsel %vm368, %v884, 0.0
          %v893 = vsel %vm367, %v885, 0.0
          %v894 = vsel %vm368, %v886, 0.0
          %v895 = vpack.c.bf16 %v893, %v891
          %v896 = vpack.c.bf16 %v894, %v892
          %897 = vst [vmem:[#allocation4 + $0x30] sm:$0xff] %v895
          %898 = vst [vmem:[#allocation4 + $0x38] sm:$0xff] %v896
          %v899 = vld [vmem:[#allocation3 + $0x8] sm:$0xff]
          %v900 = vld [vmem:[#allocation3 + $0x10] sm:$0xff]
          %v901 = vld [vmem:[#allocation3 + $0x28] sm:$0xff]
          %v902 = vld [vmem:[#allocation3 + $0x30] sm:$0xff]
          %v903 = vpack.c.bf16 %v901, %v899
          %v904 = vpack.c.bf16 %v902, %v900
          %905 = vst [vmem:[#allocation4 + $0x40] sm:$0xff] %v903
          %906 = vst [vmem:[#allocation4 + $0x48] sm:$0xff] %v904
          %v907 = vld [vmem:[#allocation3 + $0x8] sm:$0xff]
          %v908 = vld [vmem:[#allocation3 + $0x10] sm:$0xff]
          %v909 = vld [vmem:[#allocation3 + $0x18] sm:$0xff]
          %v910 = vld [vmem:[#allocation3 + $0x28] sm:$0xff]
          %v911 = vld [vmem:[#allocation3 + $0x30] sm:$0xff]
          %v912 = vld [vmem:[#allocation3 + $0x38] sm:$0xff]
          %919 = vrot.lane.b32.xlu0 %v907, 127
          %v920 = vpop.permute.xlu0 %919
          %921 = vrot.lane.b32.xlu0 %v908, 127
          %v922 = vpop.permute.xlu0 %921
          %923 = vrot.lane.b32.xlu0 %v909, 127
          %v924 = vpop.permute.xlu0 %923
          %925 = vrot.lane.b32.xlu0 %v910, 127
          %v926 = vpop.permute.xlu0 %925
          %927 = vrot.lane.b32.xlu0 %v911, 127
          %v928 = vpop.permute.xlu0 %927
          %929 = vrot.lane.b32.xlu0 %v912, 127
          %v930 = vpop.permute.xlu0 %929
          %v931 = vsel %vm547, %v920, %v922
          %v932 = vsel %vm547, %v922, %v924
          %v933 = vsel %vm547, %v926, %v928
          %v934 = vsel %vm547, %v928, %v930
          %v939 = vsel %vm437, %v931, 0.0
          %v940 = vsel %vm438, %v932, 0.0
          %v941 = vsel %vm437, %v933, 0.0
          %v942 = vsel %vm438, %v934, 0.0
          %v943 = vpack.c.bf16 %v941, %v939
          %v944 = vpack.c.bf16 %v942, %v940
          %945 = vst [vmem:[#allocation4 + $0x50] sm:$0xff] %v943
          %946 = vst [vmem:[#allocation4 + $0x58] sm:$0xff] %v944
          %v947 = vld [vmem:[#allocation3 + $0x8] sm:$0xff]
          %v948 = vld [vmem:[#allocation3 + $0x10] sm:$0xff]
          %v949 = vld [vmem:[#allocation3 + $0x18] sm:$0xff]
          %v950 = vld [vmem:[#allocation3 + $0x28] sm:$0xff]
          %v951 = vld [vmem:[#allocation3 + $0x30] sm:$0xff]
          %v952 = vld [vmem:[#allocation3 + $0x38] sm:$0xff]
          %959 = vrot.lane.b32.xlu0 %v947, 113
          %v960 = vpop.permute.xlu0 %959
          %961 = vrot.lane.b32.xlu0 %v948, 113
          %v962 = vpop.permute.xlu0 %961
          %963 = vrot.lane.b32.xlu0 %v949, 113
          %v964 = vpop.permute.xlu0 %963
          %965 = vrot.lane.b32.xlu0 %v950, 113
          %v966 = vpop.permute.xlu0 %965
          %967 = vrot.lane.b32.xlu0 %v951, 113
          %v968 = vpop.permute.xlu0 %967
          %969 = vrot.lane.b32.xlu0 %v952, 113
          %v970 = vpop.permute.xlu0 %969
          %v971 = vsel %vm588, %v960, %v962
          %v972 = vsel %vm588, %v962, %v964
          %v973 = vsel %vm588, %v966, %v968
          %v974 = vsel %vm588, %v968, %v970
          %v979 = vsel %vm367, %v971, 0.0
          %v980 = vsel %vm368, %v972, 0.0
          %v981 = vsel %vm367, %v973, 0.0
          %v982 = vsel %vm368, %v974, 0.0
          %v983 = vpack.c.bf16 %v981, %v979
          %v984 = vpack.c.bf16 %v982, %v980
          %985 = vst [vmem:[#allocation4 + $0x60] sm:$0xff] %v983
          %986 = vst [vmem:[#allocation4 + $0x68] sm:$0xff] %v984
          %v987 = vld [vmem:[#allocation3 + $0x8] sm:$0xff]
          %v988 = vld [vmem:[#allocation3 + $0x10] sm:$0xff]
          %v989 = vld [vmem:[#allocation3 + $0x18] sm:$0xff]
          %v990 = vld [vmem:[#allocation3 + $0x28] sm:$0xff]
          %v991 = vld [vmem:[#allocation3 + $0x30] sm:$0xff]
          %v992 = vld [vmem:[#allocation3 + $0x38] sm:$0xff]
          %v993 = vpack.c.bf16 %v990, %v987
          %v994 = vpack.c.bf16 %v991, %v988
          %v995 = vpack.c.bf16 %v992, %v989
          %999 = vrot.lane.b32.xlu0 %v993, 112
          %v1000 = vpop.permute.xlu0 %999
          %1001 = vrot.lane.b32.xlu0 %v994, 112
          %v1002 = vpop.permute.xlu0 %1001
          %1003 = vrot.lane.b32.xlu0 %v995, 112
          %v1004 = vpop.permute.xlu0 %1003
          %v1005 = vsel %vm623, %v1000, %v1002
          %v1006 = vsel %vm623, %v1002, %v1004
          %1009 = vst [vmem:[#allocation4 + $0x70] sm:$0xff] %v1005
          %1010 = vst [vmem:[#allocation4 + $0x78] sm:$0xff] %v1006
          %v1011 = vld [vmem:[#allocation3 + $0x8] sm:$0xff]
          %v1012 = vld [vmem:[#allocation3 + $0x10] sm:$0xff]
          %v1013 = vld [vmem:[#allocation3 + $0x18] sm:$0xff]
          %v1014 = vld [vmem:[#allocation3 + $0x28] sm:$0xff]
          %v1015 = vld [vmem:[#allocation3 + $0x30] sm:$0xff]
          %v1016 = vld [vmem:[#allocation3 + $0x38] sm:$0xff]
          %1023 = vrot.lane.b32.xlu0 %v1011, 111
          %v1024 = vpop.permute.xlu0 %1023
          %1025 = vrot.lane.b32.xlu0 %v1012, 111
          %v1026 = vpop.permute.xlu0 %1025
          %1027 = vrot.lane.b32.xlu0 %v1013, 111
          %v1028 = vpop.permute.xlu0 %1027
          %1029 = vrot.lane.b32.xlu0 %v1014, 111
          %v1030 = vpop.permute.xlu0 %1029
          %1031 = vrot.lane.b32.xlu0 %v1015, 111
          %v1032 = vpop.permute.xlu0 %1031
          %1033 = vrot.lane.b32.xlu0 %v1016, 111
          %v1034 = vpop.permute.xlu0 %1033
          %v1035 = vsel %vm654, %v1024, %v1026
          %v1036 = vsel %vm654, %v1026, %v1028
          %v1037 = vsel %vm654, %v1030, %v1032
          %v1038 = vsel %vm654, %v1032, %v1034
          %v1043 = vsel %vm437, %v1035, 0.0
          %v1044 = vsel %vm438, %v1036, 0.0
          %v1045 = vsel %vm437, %v1037, 0.0
          %v1046 = vsel %vm438, %v1038, 0.0
          %v1047 = vpack.c.bf16 %v1045, %v1043
          %v1048 = vpack.c.bf16 %v1046, %v1044
          %1049 = vst [vmem:[#allocation4 + $0x80] sm:$0xff] %v1047
          %1050 = vst [vmem:[#allocation4 + $0x88] sm:$0xff] %v1048
          %v1051 = vld [vmem:[#allocation11] sm:$0xf]
          %v1052 = vld [vmem:[#allocation4] sm:$0xff]
          %v1053 = vld [vmem:[#allocation4 + $0x8] sm:$0xff]
          %v1054 = vld [vmem:[#allocation4 + $0x10] sm:$0xff]
          %v1055 = vld [vmem:[#allocation4 + $0x18] sm:$0xff]
          %v1056 = vld [vmem:[#allocation4 + $0x20] sm:$0xff]
          %v1057 = vld [vmem:[#allocation4 + $0x28] sm:$0xff]
          %v1058 = vld [vmem:[#allocation4 + $0x30] sm:$0xff]
          %v1059 = vld [vmem:[#allocation4 + $0x38] sm:$0xff]
          %v1060 = vld [vmem:[#allocation4 + $0x40] sm:$0xff]
          %v1061 = vld [vmem:[#allocation4 + $0x48] sm:$0xff]
          %v1062 = vld [vmem:[#allocation4 + $0x50] sm:$0xff]
          %v1063 = vld [vmem:[#allocation4 + $0x58] sm:$0xff]
          %v1064 = vld [vmem:[#allocation4 + $0x60] sm:$0xff]
          %v1065 = vld [vmem:[#allocation4 + $0x68] sm:$0xff]
          %v1066 = vld [vmem:[#allocation4 + $0x70] sm:$0xff]
          %v1067 = vld [vmem:[#allocation4 + $0x78] sm:$0xff]
          %v1068 = vld [vmem:[#allocation4 + $0x80] sm:$0xff]
          %v1069 = vld [vmem:[#allocation4 + $0x88] sm:$0xff]
          %v1070 = vld [vmem:[#allocation13] sm:$0xf]
          %1072 = vset.pattern.permute.xlu0 0
          %1073 = vperm.xlu0 %1072, %v1070
          %v1074 = vpop.permute.xlu0 %1073
          %v1078 = vunpack.c.l.s4 1983009808
          %v1079 = vunpack.c.0.s8 %v1078
          %v1080 = vlaneseq
          %v1081 = vshrl.u32 %v1080, 7
          %v1082 = vsub.s32 %v1079, %v1081
          %v1083 = vrot.slane %v1051, %v1082
          %v1084 = vcombine.high %v1083, %v1083
          %v1087 = vsel %vm706, %v1084, 0
          %1089 = vmatprep.subr.bf16.mxu0 %v1053
          %1090 = vmatpush1.bf16.msra.mxu0 %v1052
          %1091 = vmatprep.subr.bf16.mxu0 %v1055
          %1092 = vmatpush1.bf16.msra.mxu0 %v1054
          %1093 = vmatprep.subr.bf16.mxu0 %v1057
          %1094 = vmatpush1.bf16.msra.mxu0 %v1056
          %1095 = vmatprep.subr.bf16.mxu0 %v1059
          %1096 = vmatpush1.bf16.msra.mxu0 %v1058
          %1097 = vmatprep.subr.bf16.mxu0 %v1061
          %1098 = vmatpush1.bf16.msra.mxu0 %v1060
          %1099 = vmatprep.subr.bf16.mxu0 %v1063
          %1100 = vmatpush1.bf16.msra.mxu0 %v1062
          %1101 = vmatprep.subr.bf16.mxu0 %v1065
          %1102 = vmatpush1.bf16.msra.mxu0 %v1064
          %1103 = vmatprep.subr.bf16.mxu0 %v1067
          %1104 = vmatpush1.bf16.msra.mxu0 %v1066
          %1105 = vmatprep.subr.bf16.mxu0 %v1069
          %1106 = vmatpush1.bf16.msra.mxu0 %v1068
          %1107 = vmatprep.subr.bf16.mxu0 0
          %1108 = vmatpush1.bf16.msra.mxu0 0
          %1109 = vmatprep.subr.bf16.mxu0 0
          %1110 = vmatpush1.bf16.msra.mxu0 0
          %1111 = vmatprep.subr.bf16.mxu0 0
          %1112 = vmatpush1.bf16.msra.mxu0 0
          %1113 = vmatprep.subr.bf16.mxu0 0
          %1114 = vmatpush1.bf16.msra.mxu0 0
          %1115 = vmatprep.subr.bf16.mxu0 0
          %1116 = vmatpush1.bf16.msra.mxu0 0
          %1117 = vmatprep.subr.bf16.mxu0 0
          %1118 = vmatpush1.bf16.msra.mxu0 0
          %1119 = vmatprep.subr.bf16.mxu0 0
          %1120 = vmatpush1.bf16.msra.mxu0 0
          %1121 = vmatprep.mubr.bf16.mxu0 %v1087
          %1122 = vmatmul.mubr.bf16.gmra.mrb[0].mxu0 %v1083
          %v1123 = vpop.f32.mrb[0].mxu0
          %v1124 = vadd.f32 %v1074, %v1123
          %v1125 = vpop.f32.mrb[0].mxu0
          %v1126 = vadd.f32 %v1074, %v1125
          %v1127 = vpop.f32.mrb[0].mxu0
          %v1128 = vpop.f32.mrb[0].mxu0
          %1129 = vdwg.mxu0
          %v1130 = vld [vmem:[#allocation2 + $0x8] sm:$0xf]
          %v1131 = vld [vmem:[#allocation2 + $0x10] sm:$0xf]
          %v1132 = vadd.f32 %v1124, %v1130
          %v1133 = vadd.f32 %v1126, %v1131
          %v1134 = vmax.f32 %v1132, 0.0
          %v1135 = vmax.f32 %v1133, 0.0
          %v1138 = vcombine.low %v1134, %v1135
          %s1140 = smul.addr %s350, 4
          %s1141 = scalar_lea.vmem %s293, %s1140 [#allocation14]
          %1142 = vst [vmem:[%s1141] sm:$0xff] %v1138
        $region65: #{basic_block_forward.1} parent=39 // loop_footer
          %s349 = sadd.s32 1, %s345
        $region66: #{basic_block_forward.1} parent=39 // loop_footer_branch
          %344 = sbr.rel target = $region62
        $region67: #{basic_block_forward.1} parent=39 // loop_exit
          _
        %s1143 = sand.u32 %s142, 1
        %s1144 = scalar_lea.sflag [#allocation7], %s1143
        %s1145 = sand.u32 %s142, 1
        %s1146 = smul.addr %s1145, 16
        %s1147 = scalar_lea.vmem [#allocation14], %s1146
        // Predicated region
        $region68: #{basic_block_forward.1} parent=39 // pred_check
          %p1148 = pneg %p152
        $region69: #{basic_block_forward.1} parent=39 // pred_check_branch
          %1150 = sbr.rel (%p1148) target = $region71
        $region70: #{basic_block_forward.1} parent=39 // pred_region
          %s1151 = smul.u32 2, %s24
          %s1153 = ssub.s32 256, 256
          %1154 = vsyncadd %s1144, %s1153
          %s1155 = smul.addr %s1151, 2
          %s1156 = smul.addr %s1155, 64
          %s1157 = scalar_lea.hbm %s5, %s1156
          %s1158 = sshll.u32 %s1147, 4
          %s1159 = int_to_ptr.vmem [resolvable:$true] %s1158
          %1164 = dma.vmem_to_hbm [thread:$0]  %s1159, 256, %s1157, %s1144, 128, 128, 8
        $region71: #{basic_block_forward.1} parent=39 // pred_fallthru
          _
      $region40: #{basic_block_forward.1} parent=5 // pred_fallthru
        _
      %p1165 = scmp.le.s32.totalorder 2, %s19
      // Predicated region
      $region72: #{basic_block_forward.1} parent=5 // pred_check
        %p1166 = pneg %p1165
      $region73: #{basic_block_forward.1} parent=5 // pred_check_branch
        %1168 = sbr.rel (%p1166) target = $region75
      $region74: #{basic_block_forward.1} parent=5 // pred_region
        %s1169 = ssub.s32 %s19, 2
        // Predicated region
        $region76: #{basic_block_forward.1} parent=74 // pred_check
          %p1170 = pneg %p158
        $region77: #{basic_block_forward.1} parent=74 // pred_check_branch
          %1172 = sbr.rel (%p1170) target = $region79
        $region78: #{basic_block_forward.1} parent=74 // pred_region
          %s1173 = sand.u32 %s143, 1
          %s1174 = scalar_lea.sflag [#allocation7], %s1173
          %s1175 = sand.u32 %s143, 1
          %s1176 = smul.addr %s1175, 16
          %s1177 = scalar_lea.vmem [#allocation14], %s1176
          %1178 = dma.done %s1174, 256
        $region79: #{basic_block_forward.1} parent=74 // pred_fallthru
          _
      $region75: #{basic_block_forward.1} parent=5 // pred_fallthru
        _
    $region6: #{basic_block_forward.1} parent=1 // loop_footer
      %s23 = sadd.s32 1, %s19
    $region7: #{basic_block_forward.1} parent=1 // loop_footer_branch
      %18 = sbr.rel target = $region3
    $region8: #{basic_block_forward.1} parent=1 // loop_exit
      _
    %1179 = vsyncpa [#allocation6], 1
    %s1180 = scalar_lea.sflag [#allocation6], 1
    %1181 = vsyncpa %s1180, 1
    %1182 = vsyncpa [#allocation9], 1
    %1183 = vsyncpa [#allocation12], 1
    %1184 = vsyncpa [#allocation7], 1
    %s1185 = scalar_lea.sflag [#allocation7], 1
    %1186 = vsyncpa %s1185, 1

</llo_original>
